<compile_context>
chip_gen: v7x
topology: tpu7x:2x2x1
jax: 0.10.0
libtpu: 0.0.40
codegen_flags: <defaults>
</compile_context>

<pallas_src>
import math
import functools

import jax
import jax.numpy as jnp
import numpy as np
from jax.experimental import pallas as pl
from jax.experimental.pallas import tpu as pltpu


def _self_attn_gate_kernel(
    x_ref,      # (Bt, S, C)      f32 activations
    mask_ref,   # (Bt, 1, 1, S)   f32 key mask
    bias_ref,   # (Bt, 1, S, S)   f32 logit bias (head-tiled by the grid)
    wf_ref,     # (C, 4*H*D)      bf16 fused [Wq|Wk|Wv|Wg]
    bg_ref,     # (1, H*D)        f32 gate bias
    wo_ref,     # (H, D, C)       bf16 output weight, head-major
    bo_ref,     # (1, C)          f32 output bias
    o_ref,      # (Bt, S, C)      output
    q_scr,      # (H, Bt, S, D)   f32 scratch
    k_scr,      # (H, Bt, S, D)   f32 scratch
    v_scr,      # (H, Bt, S, D)   f32 scratch
    g_scr,      # (H, Bt, S, D)   f32 scratch
    acc_scr,    # (Bt*S, C)       f32 accumulator over heads
    *, num_heads, c_hidden, inf):
    h = pl.program_id(1)
    Bt, S, C = x_ref.shape
    D = c_hidden
    HD = num_heads * c_hidden
    scale = 1.0 / math.sqrt(c_hidden)

    # ---- once per batch block: fused QKV+gate projection for ALL heads ----
    @pl.when(h == 0)
    def _():
        x2d = x_ref[...].reshape(Bt * S, C).astype(jnp.bfloat16)
        # One MXU pass, N = 4*H*D (lane dense), instead of four small matmuls.
        proj = jnp.dot(x2d, wf_ref[...], preferred_element_type=jnp.float32)
        for hh in range(num_heads):                       # static unroll
            lo, hi = hh * D, (hh + 1) * D
            q_scr[hh] = (proj[:, 0 * HD + lo:0 * HD + hi] * scale
                         ).reshape(Bt, S, D)
            k_scr[hh] = proj[:, 1 * HD + lo:1 * HD + hi].reshape(Bt, S, D)
            v_scr[hh] = proj[:, 2 * HD + lo:2 * HD + hi].reshape(Bt, S, D)
            g_scr[hh] = jax.nn.sigmoid(
                proj[:, 3 * HD + lo:3 * HD + hi] + bg_ref[:, lo:hi]
            ).reshape(Bt, S, D)
        acc_scr[...] = jnp.zeros_like(acc_scr)

    # ---- per-head attention (head index = grid axis 1) ----
    qh = q_scr[h].astype(jnp.bfloat16)                    # (Bt, S, D)
    kh = k_scr[h].astype(jnp.bfloat16)
    vh = v_scr[h].astype(jnp.bfloat16)

    # Batched matmul contracting the last axes (no explicit transpose).
    logits = jnp.einsum("bqd,bkd->bqk", qh, kh,
                        preferred_element_type=jnp.float32)   # (Bt, S, S) f32

    mask_add = (mask_ref[:, 0] - 1.0) * inf                   # (Bt, 1, S)
    logits = logits + mask_add + bias_ref[:, 0]               # (Bt, S, S)

    logits = logits - jnp.max(logits, axis=-1, keepdims=True)
    p = jnp.exp(logits)
    denom = jnp.sum(p, axis=-1, keepdims=True)
    p = p * pl.reciprocal(denom, approx=True)                 # EUP reciprocal

    oh = jnp.einsum("bqk,bkd->bqd", p.astype(jnp.bfloat16), vh,
                    preferred_element_type=jnp.float32)       # (Bt, S, D) f32

    gated = (oh * g_scr[h]).astype(jnp.bfloat16).reshape(Bt * S, D)
    # Per-head slice of the output projection, summed over heads in f32.
    acc_scr[...] += jnp.dot(gated, wo_ref[h],
                            preferred_element_type=jnp.float32)  # (Bt*S, C)

    # ---- last head: add output bias and store ----
    @pl.when(h == num_heads - 1)
    def _():
        out = acc_scr[...] + bo_ref[...]
        o_ref[...] = out.reshape(Bt, S, C).astype(o_ref.dtype)


def self_attention_with_gate(x, mask, bias, params, *, num_heads, c_hidden,
                             inf, block_b=None):
    B, S, C = x.shape
    H, D = num_heads, c_hidden
    HD = H * D
    wq, wk, wv, wg, bg, wo, bo = params

    if block_b is None:
        block_b = 1
        for cand in (8, 4, 2, 1):
            if B % cand == 0:
                block_b = cand
                break
    assert B % block_b == 0
    Bt = block_b

    # Fused projection weight [Wq | Wk | Wv | Wg] and head-major output weight,
    # pre-cast to bf16 (halves the weight DMA streams, f32 accumulation in-kernel).
    w_fused = jnp.concatenate([wq, wk, wv, wg], axis=1).astype(jnp.bfloat16)  # (C, 4HD)
    wo_h = wo.reshape(H, D, C).astype(jnp.bfloat16)                           # (H, D, C)
    bg2 = bg.reshape(1, HD)
    bo2 = bo.reshape(1, C)

    kernel = functools.partial(
        _self_attn_gate_kernel, num_heads=H, c_hidden=D, inf=inf)

    const = lambda shape: pl.BlockSpec(shape, lambda b, h: (0,) * len(shape))
    grid_spec = pltpu.PrefetchScalarGridSpec(
        num_scalar_prefetch=0,
        grid=(B // Bt, H),
        in_specs=[
            pl.BlockSpec((Bt, S, C), lambda b, h: (b, 0, 0)),        # x
            pl.BlockSpec((Bt, 1, 1, S), lambda b, h: (b, 0, 0, 0)),  # mask
            pl.BlockSpec((Bt, 1, S, S), lambda b, h: (b, h, 0, 0)),  # bias (head-tiled)
            const((C, 4 * HD)),                                      # fused W
            const((1, HD)),                                          # bg
            const((H, D, C)),                                        # Wo (head-major)
            const((1, C)),                                           # bo
        ],
        out_specs=pl.BlockSpec((Bt, S, C), lambda b, h: (b, 0, 0)),
        scratch_shapes=[
            pltpu.VMEM((H, Bt, S, D), jnp.float32),   # q (scaled)
            pltpu.VMEM((H, Bt, S, D), jnp.float32),   # k
            pltpu.VMEM((H, Bt, S, D), jnp.float32),   # v
            pltpu.VMEM((H, Bt, S, D), jnp.float32),   # gate
            pltpu.VMEM((Bt * S, C), jnp.float32),     # output accumulator
        ],
    )

    return pl.pallas_call(
        kernel,
        grid_spec=grid_spec,
        out_shape=jax.ShapeDtypeStruct((B, S, C), x.dtype),
        compiler_params=pltpu.CompilerParams(
            dimension_semantics=("parallel", "arbitrary")),
    )(x, mask, bias, w_fused, bg2, wo_h, bo2)


def reference_forward(x, mask, bias, params, *, num_heads, c_hidden, inf):
    """Pure-JAX f32 reference matching the PyTorch module semantics."""
    B, S, C = x.shape
    wq, wk, wv, wg, bg, wo, bo = params
    D, H = c_hidden, num_heads

    q = (x @ wq).reshape(B, S, H, D).transpose(0, 2, 1, 3) / math.sqrt(D)
    k = (x @ wk).reshape(B, S, H, D).transpose(0, 2, 1, 3)
    v = (x @ wv).reshape(B, S, H, D).transpose(0, 2, 1, 3)

    a = jnp.einsum("bhqd,bhkd->bhqk", q, k)
    a = a + (mask - 1.0) * inf
    a = a + bias
    a = jax.nn.softmax(a, axis=-1)
    o = jnp.einsum("bhqk,bhkd->bhqd", a, v)                 # (B,H,S,D)
    o = o.transpose(0, 2, 1, 3)                             # (B,S,H,D)

    g = jax.nn.sigmoid(x @ wg + bg).reshape(B, S, H, D)
    o = (o * g).reshape(B, S, H * D)
    return o @ wo + bo


if __name__ == "__main__":
    # Small shapes consistent with the module.
    B, S = 2, 8          # batch, sequence (QKV)
    c_qkv = 32
    c_hidden = 8
    num_heads = 4
    inf = 1e9
    HD = num_heads * c_hidden

    key = jax.random.PRNGKey(0)
    ks = jax.random.split(key, 10)

    def init_w(k, shape):
        fan_in = shape[0]
        return jax.random.normal(k, shape, jnp.float32) / math.sqrt(fan_in)

    wq = init_w(ks[0], (c_qkv, HD))
    wk = init_w(ks[1], (c_qkv, HD))
    wv = init_w(ks[2], (c_qkv, HD))
    wg = init_w(ks[3], (c_qkv, HD))
    bg = 0.1 * jax.random.normal(ks[4], (HD,), jnp.float32)
    wo = init_w(ks[5], (HD, c_qkv))
    bo = 0.1 * jax.random.normal(ks[6], (c_qkv,), jnp.float32)
    params = (wq, wk, wv, wg, bg, wo, bo)

    x = jax.random.normal(ks[7], (B, S, c_qkv), jnp.float32)
    mask = (jax.random.uniform(ks[8], (B, 1, 1, S)) > 0.2).astype(jnp.float32)
    bias = 0.5 * jax.random.normal(ks[9], (B, num_heads, S, S), jnp.float32)

    out = self_attention_with_gate(
        x, mask, bias, params, num_heads=num_heads, c_hidden=c_hidden,
        inf=inf, block_b=2)
    out = jax.block_until_ready(out)

    ref = reference_forward(
        x, mask, bias, params, num_heads=num_heads, c_hidden=c_hidden, inf=inf)

    # bf16 MXU operands (f32 accumulation / f32 softmax) -> relaxed tolerance.
    np.testing.assert_allclose(np.asarray(out), np.asarray(ref),
                               rtol=3e-2, atol=3e-2)

    print("KERNEL_OK")
</pallas_src>

<mosaic_0001>
module attributes {stable_mosaic.version = 11 : i64} {
  func.func @_self_attn_gate_kernel(%arg0: i32, %arg1: i32, %arg2: memref<2x8x32xf32, #tpu.memory_space<vmem>>, %arg3: memref<2x1x1x8xf32, #tpu.memory_space<vmem>>, %arg4: memref<2x1x8x8xf32, #tpu.memory_space<vmem>>, %arg5: memref<32x128xbf16, #tpu.memory_space<vmem>>, %arg6: memref<1x32xf32, #tpu.memory_space<vmem>>, %arg7: memref<4x8x32xbf16, #tpu.memory_space<vmem>>, %arg8: memref<1x32xf32, #tpu.memory_space<vmem>>, %arg9: memref<2x8x32xf32, #tpu.memory_space<vmem>>, %arg10: memref<4x2x8x8xf32, #tpu.memory_space<vmem>>, %arg11: memref<4x2x8x8xf32, #tpu.memory_space<vmem>>, %arg12: memref<4x2x8x8xf32, #tpu.memory_space<vmem>>, %arg13: memref<4x2x8x8xf32, #tpu.memory_space<vmem>>, %arg14: memref<16x32xf32, #tpu.memory_space<vmem>>) attributes {dimension_semantics = [#tpu.dimension_semantics<parallel>, #tpu.dimension_semantics<arbitrary>], iteration_bounds = array<i64: 1, 4>, scalar_prefetch = 0 : i64, scratch_operands = 5 : i64, tpu.core_type = #tpu.core_type<tc>, window_params = [{transform_indices = @transform_0, window_bounds = array<i64: 2, 8, 32>}, {transform_indices = @transform_1, window_bounds = array<i64: 2, 1, 1, 8>}, {transform_indices = @transform_2, window_bounds = array<i64: 2, 1, 8, 8>}, {pipeline_mode = #tpu.pipeline_mode<synchronous>, transform_indices = @transform_3, window_bounds = array<i64: 32, 128>}, {pipeline_mode = #tpu.pipeline_mode<synchronous>, transform_indices = @transform_4, window_bounds = array<i64: 1, 32>}, {pipeline_mode = #tpu.pipeline_mode<synchronous>, transform_indices = @transform_5, window_bounds = array<i64: 4, 8, 32>}, {pipeline_mode = #tpu.pipeline_mode<synchronous>, transform_indices = @transform_6, window_bounds = array<i64: 1, 32>}, {transform_indices = @transform_7, window_bounds = array<i64: 2, 8, 32>}]} {
    %c0_i32 = arith.constant 0 : i32
    %0 = arith.cmpi eq, %arg1, %c0_i32 : i32
    %1 = arith.extui %0 : i1 to i32
    %c0_i32_0 = arith.constant 0 : i32
    %2 = arith.cmpi ne, %1, %c0_i32_0 : i32
    scf.if %2 {
      %c0_33 = arith.constant 0 : index
      %c0_34 = arith.constant 0 : index
      %c0_35 = arith.constant 0 : index
      %55 = vector.load %arg2[%c0_33, %c0_34, %c0_35] : memref<2x8x32xf32, #tpu.memory_space<vmem>>, vector<2x8x32xf32>
      %56 = vector.shape_cast %55 : vector<2x8x32xf32> to vector<16x32xf32>
      %57 = arith.truncf %56 : vector<16x32xf32> to vector<16x32xbf16>
      %c0_36 = arith.constant 0 : index
      %c0_37 = arith.constant 0 : index
      %58 = vector.load %arg5[%c0_36, %c0_37] : memref<32x128xbf16, #tpu.memory_space<vmem>>, vector<32x128xbf16>
      %cst_38 = arith.constant dense<0.000000e+00> : vector<16x128xf32>
      %59 = tpu.matmul %57, %58, %cst_38 {dimension_numbers = #tpu.dot_dimension_numbers<[1], [0], [0], [1], [0, 0, 1, 1], [], []>} : vector<16x32xbf16>, vector<32x128xbf16>, vector<16x128xf32> -> vector<16x128xf32>
      %60 = vector.extract_strided_slice %59 {offsets = [0, 0], sizes = [16, 8], strides = [1, 1]} : vector<16x128xf32> to vector<16x8xf32>
      %cst_39 = arith.constant 0.353553385 : f32
      %61 = vector.broadcast %cst_39 : f32 to vector<16x8xf32>
      %62 = arith.mulf %60, %61 : vector<16x8xf32>
      %63 = vector.shape_cast %62 : vector<16x8xf32> to vector<2x8x8xf32>
      %c0_40 = arith.constant 0 : index
      %c0_41 = arith.constant 0 : index
      %c0_42 = arith.constant 0 : index
      %c0_43 = arith.constant 0 : index
      %64 = vector.load %arg10[%c0_40, %c0_41, %c0_42, %c0_43] : memref<4x2x8x8xf32, #tpu.memory_space<vmem>>, vector<1x2x8x8xf32>
      %65 = vector.shape_cast %64 : vector<1x2x8x8xf32> to vector<2x8x8xf32>
      %66 = vector.shape_cast %63 : vector<2x8x8xf32> to vector<1x2x8x8xf32>
      tpu.vector_store %arg10[%c0_40, %c0_41, %c0_42, %c0_43], %66 {strides = array<i32>} : memref<4x2x8x8xf32, #tpu.memory_space<vmem>>, vector<1x2x8x8xf32>,
      %67 = vector.extract_strided_slice %59 {offsets = [0, 32], sizes = [16, 8], strides = [1, 1]} : vector<16x128xf32> to vector<16x8xf32>
      %68 = vector.shape_cast %67 : vector<16x8xf32> to vector<2x8x8xf32>
      %c0_44 = arith.constant 0 : index
      %c0_45 = arith.constant 0 : index
      %c0_46 = arith.constant 0 : index
      %c0_47 = arith.constant 0 : index
      %69 = vector.load %arg11[%c0_44, %c0_45, %c0_46, %c0_47] : memref<4x2x8x8xf32, #tpu.memory_space<vmem>>, vector<1x2x8x8xf32>
      %70 = vector.shape_cast %69 : vector<1x2x8x8xf32> to vector<2x8x8xf32>
      %71 = vector.shape_cast %68 : vector<2x8x8xf32> to vector<1x2x8x8xf32>
      tpu.vector_store %arg11[%c0_44, %c0_45, %c0_46, %c0_47], %71 {strides = array<i32>} : memref<4x2x8x8xf32, #tpu.memory_space<vmem>>, vector<1x2x8x8xf32>,
      %72 = vector.extract_strided_slice %59 {offsets = [0, 64], sizes = [16, 8], strides = [1, 1]} : vector<16x128xf32> to vector<16x8xf32>
      %73 = vector.shape_cast %72 : vector<16x8xf32> to vector<2x8x8xf32>
      %c0_48 = arith.constant 0 : index
      %c0_49 = arith.constant 0 : index
      %c0_50 = arith.constant 0 : index
      %c0_51 = arith.constant 0 : index
      %74 = vector.load %arg12[%c0_48, %c0_49, %c0_50, %c0_51] : memref<4x2x8x8xf32, #tpu.memory_space<vmem>>, vector<1x2x8x8xf32>
      %75 = vector.shape_cast %74 : vector<1x2x8x8xf32> to vector<2x8x8xf32>
      %76 = vector.shape_cast %73 : vector<2x8x8xf32> to vector<1x2x8x8xf32>
      tpu.vector_store %arg12[%c0_48, %c0_49, %c0_50, %c0_51], %76 {strides = array<i32>} : memref<4x2x8x8xf32, #tpu.memory_space<vmem>>, vector<1x2x8x8xf32>,
      %77 = vector.extract_strided_slice %59 {offsets = [0, 96], sizes = [16, 8], strides = [1, 1]} : vector<16x128xf32> to vector<16x8xf32>
      %c0_52 = arith.constant 0 : index
      %c0_53 = arith.constant 0 : index
      %78 = vector.load %arg6[%c0_52, %c0_53] : memref<1x32xf32, #tpu.memory_space<vmem>>, vector<1x8xf32>
      %79 = vector.broadcast %78 : vector<1x8xf32> to vector<16x8xf32>
      %80 = arith.addf %77, %79 : vector<16x8xf32>
      %81 = arith.negf %80 : vector<16x8xf32>
      %82 = math.exp %81 : vector<16x8xf32>
      %cst_54 = arith.constant 1.000000e+00 : f32
      %83 = vector.broadcast %cst_54 : f32 to vector<16x8xf32>
      %84 = arith.addf %83, %82 : vector<16x8xf32>
      %85 = arith.divf %83, %84 : vector<16x8xf32>
      %86 = vector.shape_cast %85 : vector<16x8xf32> to vector<2x8x8xf32>
      %c0_55 = arith.constant 0 : index
      %c0_56 = arith.constant 0 : index
      %c0_57 = arith.constant 0 : index
      %c0_58 = arith.constant 0 : index
      %87 = vector.load %arg13[%c0_55, %c0_56, %c0_57, %c0_58] : memref<4x2x8x8xf32, #tpu.memory_space<vmem>>, vector<1x2x8x8xf32>
      %88 = vector.shape_cast %87 : vector<1x2x8x8xf32> to vector<2x8x8xf32>
      %89 = vector.shape_cast %86 : vector<2x8x8xf32> to vector<1x2x8x8xf32>
      tpu.vector_store %arg13[%c0_55, %c0_56, %c0_57, %c0_58], %89 {strides = array<i32>} : memref<4x2x8x8xf32, #tpu.memory_space<vmem>>, vector<1x2x8x8xf32>,
      %90 = vector.extract_strided_slice %59 {offsets = [0, 8], sizes = [16, 8], strides = [1, 1]} : vector<16x128xf32> to vector<16x8xf32>
      %cst_59 = arith.constant 0.353553385 : f32
      %91 = vector.broadcast %cst_59 : f32 to vector<16x8xf32>
      %92 = arith.mulf %90, %91 : vector<16x8xf32>
      %93 = vector.shape_cast %92 : vector<16x8xf32> to vector<2x8x8xf32>
      %c1 = arith.constant 1 : index
      %c0_60 = arith.constant 0 : index
      %c0_61 = arith.constant 0 : index
      %c0_62 = arith.constant 0 : index
      %94 = vector.load %arg10[%c1, %c0_60, %c0_61, %c0_62] : memref<4x2x8x8xf32, #tpu.memory_space<vmem>>, vector<1x2x8x8xf32>
      %95 = vector.shape_cast %94 : vector<1x2x8x8xf32> to vector<2x8x8xf32>
      %96 = vector.shape_cast %93 : vector<2x8x8xf32> to vector<1x2x8x8xf32>
      tpu.vector_store %arg10[%c1, %c0_60, %c0_61, %c0_62], %96 {strides = array<i32>} : memref<4x2x8x8xf32, #tpu.memory_space<vmem>>, vector<1x2x8x8xf32>,
      %97 = vector.extract_strided_slice %59 {offsets = [0, 40], sizes = [16, 8], strides = [1, 1]} : vector<16x128xf32> to vector<16x8xf32>
      %98 = vector.shape_cast %97 : vector<16x8xf32> to vector<2x8x8xf32>
      %c1_63 = arith.constant 1 : index
      %c0_64 = arith.constant 0 : index
      %c0_65 = arith.constant 0 : index
      %c0_66 = arith.constant 0 : index
      %99 = vector.load %arg11[%c1_63, %c0_64, %c0_65, %c0_66] : memref<4x2x8x8xf32, #tpu.memory_space<vmem>>, vector<1x2x8x8xf32>
      %100 = vector.shape_cast %99 : vector<1x2x8x8xf32> to vector<2x8x8xf32>
      %101 = vector.shape_cast %98 : vector<2x8x8xf32> to vector<1x2x8x8xf32>
      tpu.vector_store %arg11[%c1_63, %c0_64, %c0_65, %c0_66], %101 {strides = array<i32>} : memref<4x2x8x8xf32, #tpu.memory_space<vmem>>, vector<1x2x8x8xf32>,
      %102 = vector.extract_strided_slice %59 {offsets = [0, 72], sizes = [16, 8], strides = [1, 1]} : vector<16x128xf32> to vector<16x8xf32>
      %103 = vector.shape_cast %102 : vector<16x8xf32> to vector<2x8x8xf32>
      %c1_67 = arith.constant 1 : index
      %c0_68 = arith.constant 0 : index
      %c0_69 = arith.constant 0 : index
      %c0_70 = arith.constant 0 : index
      %104 = vector.load %arg12[%c1_67, %c0_68, %c0_69, %c0_70] : memref<4x2x8x8xf32, #tpu.memory_space<vmem>>, vector<1x2x8x8xf32>
      %105 = vector.shape_cast %104 : vector<1x2x8x8xf32> to vector<2x8x8xf32>
      %106 = vector.shape_cast %103 : vector<2x8x8xf32> to vector<1x2x8x8xf32>
      tpu.vector_store %arg12[%c1_67, %c0_68, %c0_69, %c0_70], %106 {strides = array<i32>} : memref<4x2x8x8xf32, #tpu.memory_space<vmem>>, vector<1x2x8x8xf32>,
      %107 = vector.extract_strided_slice %59 {offsets = [0, 104], sizes = [16, 8], strides = [1, 1]} : vector<16x128xf32> to vector<16x8xf32>
      %c0_71 = arith.constant 0 : index
      %c8 = arith.constant 8 : index
      %108 = vector.load %arg6[%c0_71, %c8] : memref<1x32xf32, #tpu.memory_space<vmem>>, vector<1x8xf32>
      %109 = vector.broadcast %108 : vector<1x8xf32> to vector<16x8xf32>
      %110 = arith.addf %107, %109 : vector<16x8xf32>
      %111 = arith.negf %110 : vector<16x8xf32>
      %112 = math.exp %111 : vector<16x8xf32>
      %cst_72 = arith.constant 1.000000e+00 : f32
      %113 = vector.broadcast %cst_72 : f32 to vector<16x8xf32>
      %114 = arith.addf %113, %112 : vector<16x8xf32>
      %115 = arith.divf %113, %114 : vector<16x8xf32>
      %116 = vector.shape_cast %115 : vector<16x8xf32> to vector<2x8x8xf32>
      %c1_73 = arith.constant 1 : index
      %c0_74 = arith.constant 0 : index
      %c0_75 = arith.constant 0 : index
      %c0_76 = arith.constant 0 : index
      %117 = vector.load %arg13[%c1_73, %c0_74, %c0_75, %c0_76] : memref<4x2x8x8xf32, #tpu.memory_space<vmem>>, vector<1x2x8x8xf32>
      %118 = vector.shape_cast %117 : vector<1x2x8x8xf32> to vector<2x8x8xf32>
      %119 = vector.shape_cast %116 : vector<2x8x8xf32> to vector<1x2x8x8xf32>
      tpu.vector_store %arg13[%c1_73, %c0_74, %c0_75, %c0_76], %119 {strides = array<i32>} : memref<4x2x8x8xf32, #tpu.memory_space<vmem>>, vector<1x2x8x8xf32>,
      %120 = vector.extract_strided_slice %59 {offsets = [0, 16], sizes = [16, 8], strides = [1, 1]} : vector<16x128xf32> to vector<16x8xf32>
      %cst_77 = arith.constant 0.353553385 : f32
      %121 = vector.broadcast %cst_77 : f32 to vector<16x8xf32>
      %122 = arith.mulf %120, %121 : vector<16x8xf32>
      %123 = vector.shape_cast %122 : vector<16x8xf32> to vector<2x8x8xf32>
      %c2 = arith.constant 2 : index
      %c0_78 = arith.constant 0 : index
      %c0_79 = arith.constant 0 : index
      %c0_80 = arith.constant 0 : index
      %124 = vector.load %arg10[%c2, %c0_78, %c0_79, %c0_80] : memref<4x2x8x8xf32, #tpu.memory_space<vmem>>, vector<1x2x8x8xf32>
      %125 = vector.shape_cast %124 : vector<1x2x8x8xf32> to vector<2x8x8xf32>
      %126 = vector.shape_cast %123 : vector<2x8x8xf32> to vector<1x2x8x8xf32>
      tpu.vector_store %arg10[%c2, %c0_78, %c0_79, %c0_80], %126 {strides = array<i32>} : memref<4x2x8x8xf32, #tpu.memory_space<vmem>>, vector<1x2x8x8xf32>,
      %127 = vector.extract_strided_slice %59 {offsets = [0, 48], sizes = [16, 8], strides = [1, 1]} : vector<16x128xf32> to vector<16x8xf32>
      %128 = vector.shape_cast %127 : vector<16x8xf32> to vector<2x8x8xf32>
      %c2_81 = arith.constant 2 : index
      %c0_82 = arith.constant 0 : index
      %c0_83 = arith.constant 0 : index
      %c0_84 = arith.constant 0 : index
      %129 = vector.load %arg11[%c2_81, %c0_82, %c0_83, %c0_84] : memref<4x2x8x8xf32, #tpu.memory_space<vmem>>, vector<1x2x8x8xf32>
      %130 = vector.shape_cast %129 : vector<1x2x8x8xf32> to vector<2x8x8xf32>
      %131 = vector.shape_cast %128 : vector<2x8x8xf32> to vector<1x2x8x8xf32>
      tpu.vector_store %arg11[%c2_81, %c0_82, %c0_83, %c0_84], %131 {strides = array<i32>} : memref<4x2x8x8xf32, #tpu.memory_space<vmem>>, vector<1x2x8x8xf32>,
      %132 = vector.extract_strided_slice %59 {offsets = [0, 80], sizes = [16, 8], strides = [1, 1]} : vector<16x128xf32> to vector<16x8xf32>
      %133 = vector.shape_cast %132 : vector<16x8xf32> to vector<2x8x8xf32>
      %c2_85 = arith.constant 2 : index
      %c0_86 = arith.constant 0 : index
      %c0_87 = arith.constant 0 : index
      %c0_88 = arith.constant 0 : index
      %134 = vector.load %arg12[%c2_85, %c0_86, %c0_87, %c0_88] : memref<4x2x8x8xf32, #tpu.memory_space<vmem>>, vector<1x2x8x8xf32>
      %135 = vector.shape_cast %134 : vector<1x2x8x8xf32> to vector<2x8x8xf32>
      %136 = vector.shape_cast %133 : vector<2x8x8xf32> to vector<1x2x8x8xf32>
      tpu.vector_store %arg12[%c2_85, %c0_86, %c0_87, %c0_88], %136 {strides = array<i32>} : memref<4x2x8x8xf32, #tpu.memory_space<vmem>>, vector<1x2x8x8xf32>,
      %137 = vector.extract_strided_slice %59 {offsets = [0, 112], sizes = [16, 8], strides = [1, 1]} : vector<16x128xf32> to vector<16x8xf32>
      %c0_89 = arith.constant 0 : index
      %c16 = arith.constant 16 : index
      %138 = vector.load %arg6[%c0_89, %c16] : memref<1x32xf32, #tpu.memory_space<vmem>>, vector<1x8xf32>
      %139 = vector.broadcast %138 : vector<1x8xf32> to vector<16x8xf32>
      %140 = arith.addf %137, %139 : vector<16x8xf32>
      %141 = arith.negf %140 : vector<16x8xf32>
      %142 = math.exp %141 : vector<16x8xf32>
      %cst_90 = arith.constant 1.000000e+00 : f32
      %143 = vector.broadcast %cst_90 : f32 to vector<16x8xf32>
      %144 = arith.addf %143, %142 : vector<16x8xf32>
      %145 = arith.divf %143, %144 : vector<16x8xf32>
      %146 = vector.shape_cast %145 : vector<16x8xf32> to vector<2x8x8xf32>
      %c2_91 = arith.constant 2 : index
      %c0_92 = arith.constant 0 : index
      %c0_93 = arith.constant 0 : index
      %c0_94 = arith.constant 0 : index
      %147 = vector.load %arg13[%c2_91, %c0_92, %c0_93, %c0_94] : memref<4x2x8x8xf32, #tpu.memory_space<vmem>>, vector<1x2x8x8xf32>
      %148 = vector.shape_cast %147 : vector<1x2x8x8xf32> to vector<2x8x8xf32>
      %149 = vector.shape_cast %146 : vector<2x8x8xf32> to vector<1x2x8x8xf32>
      tpu.vector_store %arg13[%c2_91, %c0_92, %c0_93, %c0_94], %149 {strides = array<i32>} : memref<4x2x8x8xf32, #tpu.memory_space<vmem>>, vector<1x2x8x8xf32>,
      %150 = vector.extract_strided_slice %59 {offsets = [0, 24], sizes = [16, 8], strides = [1, 1]} : vector<16x128xf32> to vector<16x8xf32>
      %cst_95 = arith.constant 0.353553385 : f32
      %151 = vector.broadcast %cst_95 : f32 to vector<16x8xf32>
      %152 = arith.mulf %150, %151 : vector<16x8xf32>
      %153 = vector.shape_cast %152 : vector<16x8xf32> to vector<2x8x8xf32>
      %c3 = arith.constant 3 : index
      %c0_96 = arith.constant 0 : index
      %c0_97 = arith.constant 0 : index
      %c0_98 = arith.constant 0 : index
      %154 = vector.load %arg10[%c3, %c0_96, %c0_97, %c0_98] : memref<4x2x8x8xf32, #tpu.memory_space<vmem>>, vector<1x2x8x8xf32>
      %155 = vector.shape_cast %154 : vector<1x2x8x8xf32> to vector<2x8x8xf32>
      %156 = vector.shape_cast %153 : vector<2x8x8xf32> to vector<1x2x8x8xf32>
      tpu.vector_store %arg10[%c3, %c0_96, %c0_97, %c0_98], %156 {strides = array<i32>} : memref<4x2x8x8xf32, #tpu.memory_space<vmem>>, vector<1x2x8x8xf32>,
      %157 = vector.extract_strided_slice %59 {offsets = [0, 56], sizes = [16, 8], strides = [1, 1]} : vector<16x128xf32> to vector<16x8xf32>
      %158 = vector.shape_cast %157 : vector<16x8xf32> to vector<2x8x8xf32>
      %c3_99 = arith.constant 3 : index
      %c0_100 = arith.constant 0 : index
      %c0_101 = arith.constant 0 : index
      %c0_102 = arith.constant 0 : index
      %159 = vector.load %arg11[%c3_99, %c0_100, %c0_101, %c0_102] : memref<4x2x8x8xf32, #tpu.memory_space<vmem>>, vector<1x2x8x8xf32>
      %160 = vector.shape_cast %159 : vector<1x2x8x8xf32> to vector<2x8x8xf32>
      %161 = vector.shape_cast %158 : vector<2x8x8xf32> to vector<1x2x8x8xf32>
      tpu.vector_store %arg11[%c3_99, %c0_100, %c0_101, %c0_102], %161 {strides = array<i32>} : memref<4x2x8x8xf32, #tpu.memory_space<vmem>>, vector<1x2x8x8xf32>,
      %162 = vector.extract_strided_slice %59 {offsets = [0, 88], sizes = [16, 8], strides = [1, 1]} : vector<16x128xf32> to vector<16x8xf32>
      %163 = vector.shape_cast %162 : vector<16x8xf32> to vector<2x8x8xf32>
      %c3_103 = arith.constant 3 : index
      %c0_104 = arith.constant 0 : index
      %c0_105 = arith.constant 0 : index
      %c0_106 = arith.constant 0 : index
      %164 = vector.load %arg12[%c3_103, %c0_104, %c0_105, %c0_106] : memref<4x2x8x8xf32, #tpu.memory_space<vmem>>, vector<1x2x8x8xf32>
      %165 = vector.shape_cast %164 : vector<1x2x8x8xf32> to vector<2x8x8xf32>
      %166 = vector.shape_cast %163 : vector<2x8x8xf32> to vector<1x2x8x8xf32>
      tpu.vector_store %arg12[%c3_103, %c0_104, %c0_105, %c0_106], %166 {strides = array<i32>} : memref<4x2x8x8xf32, #tpu.memory_space<vmem>>, vector<1x2x8x8xf32>,
      %167 = vector.extract_strided_slice %59 {offsets = [0, 120], sizes = [16, 8], strides = [1, 1]} : vector<16x128xf32> to vector<16x8xf32>
      %c0_107 = arith.constant 0 : index
      %c24 = arith.constant 24 : index
      %168 = vector.load %arg6[%c0_107, %c24] : memref<1x32xf32, #tpu.memory_space<vmem>>, vector<1x8xf32>
      %169 = vector.broadcast %168 : vector<1x8xf32> to vector<16x8xf32>
      %170 = arith.addf %167, %169 : vector<16x8xf32>
      %171 = arith.negf %170 : vector<16x8xf32>
      %172 = math.exp %171 : vector<16x8xf32>
      %cst_108 = arith.constant 1.000000e+00 : f32
      %173 = vector.broadcast %cst_108 : f32 to vector<16x8xf32>
      %174 = arith.addf %173, %172 : vector<16x8xf32>
      %175 = arith.divf %173, %174 : vector<16x8xf32>
      %176 = vector.shape_cast %175 : vector<16x8xf32> to vector<2x8x8xf32>
      %c3_109 = arith.constant 3 : index
      %c0_110 = arith.constant 0 : index
      %c0_111 = arith.constant 0 : index
      %c0_112 = arith.constant 0 : index
      %177 = vector.load %arg13[%c3_109, %c0_110, %c0_111, %c0_112] : memref<4x2x8x8xf32, #tpu.memory_space<vmem>>, vector<1x2x8x8xf32>
      %178 = vector.shape_cast %177 : vector<1x2x8x8xf32> to vector<2x8x8xf32>
      %179 = vector.shape_cast %176 : vector<2x8x8xf32> to vector<1x2x8x8xf32>
      tpu.vector_store %arg13[%c3_109, %c0_110, %c0_111, %c0_112], %179 {strides = array<i32>} : memref<4x2x8x8xf32, #tpu.memory_space<vmem>>, vector<1x2x8x8xf32>,
      %cst_113 = arith.constant 0.000000e+00 : f32
      %180 = vector.broadcast %cst_113 : f32 to vector<16x32xf32>
      %c0_114 = arith.constant 0 : index
      %c0_115 = arith.constant 0 : index
      %181 = vector.load %arg14[%c0_114, %c0_115] : memref<16x32xf32, #tpu.memory_space<vmem>>, vector<16x32xf32>
      tpu.vector_store %arg14[%c0_114, %c0_115], %180 {strides = array<i32>} : memref<16x32xf32, #tpu.memory_space<vmem>>, vector<16x32xf32>,
    } else {
    }
    %3 = arith.index_cast %arg1 : i32 to index
    %c0 = arith.constant 0 : index
    %c0_1 = arith.constant 0 : index
    %c0_2 = arith.constant 0 : index
    %4 = vector.load %arg10[%3, %c0, %c0_1, %c0_2] : memref<4x2x8x8xf32, #tpu.memory_space<vmem>>, vector<1x2x8x8xf32>
    %5 = vector.shape_cast %4 : vector<1x2x8x8xf32> to vector<2x8x8xf32>
    %6 = arith.truncf %5 : vector<2x8x8xf32> to vector<2x8x8xbf16>
    %7 = arith.index_cast %arg1 : i32 to index
    %c0_3 = arith.constant 0 : index
    %c0_4 = arith.constant 0 : index
    %c0_5 = arith.constant 0 : index
    %8 = vector.load %arg11[%7, %c0_3, %c0_4, %c0_5] : memref<4x2x8x8xf32, #tpu.memory_space<vmem>>, vector<1x2x8x8xf32>
    %9 = vector.shape_cast %8 : vector<1x2x8x8xf32> to vector<2x8x8xf32>
    %10 = arith.truncf %9 : vector<2x8x8xf32> to vector<2x8x8xbf16>
    %11 = arith.index_cast %arg1 : i32 to index
    %c0_6 = arith.constant 0 : index
    %c0_7 = arith.constant 0 : index
    %c0_8 = arith.constant 0 : index
    %12 = vector.load %arg12[%11, %c0_6, %c0_7, %c0_8] : memref<4x2x8x8xf32, #tpu.memory_space<vmem>>, vector<1x2x8x8xf32>
    %13 = vector.shape_cast %12 : vector<1x2x8x8xf32> to vector<2x8x8xf32>
    %14 = arith.truncf %13 : vector<2x8x8xf32> to vector<2x8x8xbf16>
    "tpu.trace_start"() <{level = 10 : i32, message = "bqd,bkd->bqk"}> : () -> ()
    %cst = arith.constant dense<0.000000e+00> : vector<2x8x8xf32>
    %15 = tpu.matmul %6, %10, %cst {dimension_numbers = #tpu.dot_dimension_numbers<[2], [2], [1], [1], [0, 0, 0, 1, 1, 1], [0], [0]>} : vector<2x8x8xbf16>, vector<2x8x8xbf16>, vector<2x8x8xf32> -> vector<2x8x8xf32>
    "tpu.trace_stop"() : () -> ()
    %c0_9 = arith.constant 0 : index
    %c0_10 = arith.constant 0 : index
    %c0_11 = arith.constant 0 : index
    %c0_12 = arith.constant 0 : index
    %16 = vector.load %arg3[%c0_9, %c0_10, %c0_11, %c0_12] : memref<2x1x1x8xf32, #tpu.memory_space<vmem>>, vector<2x1x1x8xf32>
    %17 = vector.shape_cast %16 : vector<2x1x1x8xf32> to vector<2x1x8xf32>
    %cst_13 = arith.constant 1.000000e+00 : f32
    %18 = vector.broadcast %cst_13 : f32 to vector<2x1x8xf32>
    %19 = arith.subf %17, %18 : vector<2x1x8xf32>
    %cst_14 = arith.constant 1.000000e+09 : f32
    %20 = vector.broadcast %cst_14 : f32 to vector<2x1x8xf32>
    %21 = arith.mulf %19, %20 : vector<2x1x8xf32>
    %22 = vector.broadcast %21 : vector<2x1x8xf32> to vector<2x8x8xf32>
    %23 = arith.addf %15, %22 : vector<2x8x8xf32>
    %c0_15 = arith.constant 0 : index
    %c0_16 = arith.constant 0 : index
    %c0_17 = arith.constant 0 : index
    %c0_18 = arith.constant 0 : index
    %24 = vector.load %arg4[%c0_15, %c0_16, %c0_17, %c0_18] : memref<2x1x8x8xf32, #tpu.memory_space<vmem>>, vector<2x1x8x8xf32>
    %25 = vector.shape_cast %24 : vector<2x1x8x8xf32> to vector<2x8x8xf32>
    %26 = arith.addf %23, %25 : vector<2x8x8xf32>
    %cst_19 = arith.constant dense<0xFF800000> : vector<2x8xf32>
    %27 = vector.multi_reduction <maximumf>, %26, %cst_19 [2] : vector<2x8x8xf32> to vector<2x8xf32>
    %28 = vector.shape_cast %27 : vector<2x8xf32> to vector<2x8x1xf32>
    %29 = vector.broadcast %28 : vector<2x8x1xf32> to vector<2x8x8xf32>
    %30 = arith.subf %26, %29 : vector<2x8x8xf32>
    %31 = math.exp %30 : vector<2x8x8xf32>
    %cst_20 = arith.constant dense<0.000000e+00> : vector<2x8xf32>
    %32 = vector.multi_reduction <add>, %31, %cst_20 [2] : vector<2x8x8xf32> to vector<2x8xf32>
    %33 = vector.shape_cast %32 : vector<2x8xf32> to vector<2x8x1xf32>
    %34 = tpu.reciprocal %33 {approx = true} : vector<2x8x1xf32> -> vector<2x8x1xf32>
    %35 = vector.broadcast %34 : vector<2x8x1xf32> to vector<2x8x8xf32>
    %36 = arith.mulf %31, %35 : vector<2x8x8xf32>
    %37 = arith.truncf %36 : vector<2x8x8xf32> to vector<2x8x8xbf16>
    "tpu.trace_start"() <{level = 10 : i32, message = "bqk,bkd->bqd"}> : () -> ()
    %cst_21 = arith.constant dense<0.000000e+00> : vector<2x8x8xf32>
    %38 = tpu.matmul %37, %14, %cst_21 {dimension_numbers = #tpu.dot_dimension_numbers<[2], [1], [1], [2], [0, 0, 0, 1, 1, 2], [0], [0]>} : vector<2x8x8xbf16>, vector<2x8x8xbf16>, vector<2x8x8xf32> -> vector<2x8x8xf32>
    "tpu.trace_stop"() : () -> ()
    %39 = arith.index_cast %arg1 : i32 to index
    %c0_22 = arith.constant 0 : index
    %c0_23 = arith.constant 0 : index
    %c0_24 = arith.constant 0 : index
    %40 = vector.load %arg13[%39, %c0_22, %c0_23, %c0_24] : memref<4x2x8x8xf32, #tpu.memory_space<vmem>>, vector<1x2x8x8xf32>
    %41 = vector.shape_cast %40 : vector<1x2x8x8xf32> to vector<2x8x8xf32>
    %42 = arith.mulf %38, %41 : vector<2x8x8xf32>
    %43 = arith.truncf %42 : vector<2x8x8xf32> to vector<2x8x8xbf16>
    %44 = vector.shape_cast %43 : vector<2x8x8xbf16> to vector<16x8xbf16>
    %c0_25 = arith.constant 0 : index
    %c0_26 = arith.constant 0 : index
    %45 = vector.load %arg14[%c0_25, %c0_26] : memref<16x32xf32, #tpu.memory_space<vmem>>, vector<16x32xf32>
    %46 = arith.index_cast %arg1 : i32 to index
    %c0_27 = arith.constant 0 : index
    %c0_28 = arith.constant 0 : index
    %47 = vector.load %arg7[%46, %c0_27, %c0_28] : memref<4x8x32xbf16, #tpu.memory_space<vmem>>, vector<1x8x32xbf16>
    %48 = vector.shape_cast %47 : vector<1x8x32xbf16> to vector<8x32xbf16>
    %cst_29 = arith.constant dense<0.000000e+00> : vector<16x32xf32>
    %49 = tpu.matmul %44, %48, %cst_29 {dimension_numbers = #tpu.dot_dimension_numbers<[1], [0], [0], [1], [0, 0, 1, 1], [], []>} : vector<16x8xbf16>, vector<8x32xbf16>, vector<16x32xf32> -> vector<16x32xf32>
    %50 = arith.addf %45, %49 : vector<16x32xf32>
    %c0_30 = arith.constant 0 : index
    %c0_31 = arith.constant 0 : index
    %51 = vector.load %arg14[%c0_30, %c0_31] : memref<16x32xf32, #tpu.memory_space<vmem>>, vector<16x32xf32>
    tpu.vector_store %arg14[%c0_30, %c0_31], %50 {strides = array<i32>} : memref<16x32xf32, #tpu.memory_space<vmem>>, vector<16x32xf32>,
    %c3_i32 = arith.constant 3 : i32
    %52 = arith.cmpi eq, %arg1, %c3_i32 : i32
    %53 = arith.extui %52 : i1 to i32
    %c0_i32_32 = arith.constant 0 : i32
    %54 = arith.cmpi ne, %53, %c0_i32_32 : i32
    scf.if %54 {
      %c0_33 = arith.constant 0 : index
      %c0_34 = arith.constant 0 : index
      %55 = vector.load %arg14[%c0_33, %c0_34] : memref<16x32xf32, #tpu.memory_space<vmem>>, vector<16x32xf32>
      %c0_35 = arith.constant 0 : index
      %c0_36 = arith.constant 0 : index
      %56 = vector.load %arg8[%c0_35, %c0_36] : memref<1x32xf32, #tpu.memory_space<vmem>>, vector<1x32xf32>
      %57 = vector.broadcast %56 : vector<1x32xf32> to vector<16x32xf32>
      %58 = arith.addf %55, %57 : vector<16x32xf32>
      %59 = vector.shape_cast %58 : vector<16x32xf32> to vector<2x8x32xf32>
      %c0_37 = arith.constant 0 : index
      %c0_38 = arith.constant 0 : index
      %c0_39 = arith.constant 0 : index
      %60 = vector.load %arg9[%c0_37, %c0_38, %c0_39] : memref<2x8x32xf32, #tpu.memory_space<vmem>>, vector<2x8x32xf32>
      tpu.vector_store %arg9[%c0_37, %c0_38, %c0_39], %59 {strides = array<i32>} : memref<2x8x32xf32, #tpu.memory_space<vmem>>, vector<2x8x32xf32>,
    } else {
    }
    return
  }
  func.func @transform_0(%arg0: i32, %arg1: i32) -> (i32, i32, i32) {
    %c0_i32 = arith.constant 0 : i32
    %c0_i32_0 = arith.constant 0 : i32
    %c0_i32_1 = arith.constant 0 : i32
    return %arg0, %c0_i32, %c0_i32_0 : i32, i32, i32
  }
  func.func @transform_1(%arg0: i32, %arg1: i32) -> (i32, i32, i32, i32) {
    %c0_i32 = arith.constant 0 : i32
    %c0_i32_0 = arith.constant 0 : i32
    %c0_i32_1 = arith.constant 0 : i32
    %c0_i32_2 = arith.constant 0 : i32
    return %arg0, %c0_i32, %c0_i32_0, %c0_i32_1 : i32, i32, i32, i32
  }
  func.func @transform_2(%arg0: i32, %arg1: i32) -> (i32, i32, i32, i32) {
    %c0_i32 = arith.constant 0 : i32
    %c0_i32_0 = arith.constant 0 : i32
    %c0_i32_1 = arith.constant 0 : i32
    return %arg0, %arg1, %c0_i32, %c0_i32_0 : i32, i32, i32, i32
  }
  func.func @transform_3(%arg0: i32, %arg1: i32) -> (i32, i32) {
    %c0_i32 = arith.constant 0 : i32
    %c0_i32_0 = arith.constant 0 : i32
    %c0_i32_1 = arith.constant 0 : i32
    return %c0_i32, %c0_i32_0 : i32, i32
  }
  func.func @transform_4(%arg0: i32, %arg1: i32) -> (i32, i32) {
    %c0_i32 = arith.constant 0 : i32
    %c0_i32_0 = arith.constant 0 : i32
    %c0_i32_1 = arith.constant 0 : i32
    return %c0_i32, %c0_i32_0 : i32, i32
  }
  func.func @transform_5(%arg0: i32, %arg1: i32) -> (i32, i32, i32) {
    %c0_i32 = arith.constant 0 : i32
    %c0_i32_0 = arith.constant 0 : i32
    %c0_i32_1 = arith.constant 0 : i32
    %c0_i32_2 = arith.constant 0 : i32
    return %c0_i32, %c0_i32_0, %c0_i32_1 : i32, i32, i32
  }
  func.func @transform_6(%arg0: i32, %arg1: i32) -> (i32, i32) {
    %c0_i32 = arith.constant 0 : i32
    %c0_i32_0 = arith.constant 0 : i32
    %c0_i32_1 = arith.constant 0 : i32
    return %c0_i32, %c0_i32_0 : i32, i32
  }
  func.func @transform_7(%arg0: i32, %arg1: i32) -> (i32, i32, i32) {
    %c0_i32 = arith.constant 0 : i32
    %c0_i32_0 = arith.constant 0 : i32
    %c0_i32_1 = arith.constant 0 : i32
    return %arg0, %c0_i32, %c0_i32_0 : i32, i32, i32
  }
}

</mosaic_0001>

<llo_original>
// kernel: tpu_custom_call.1
$region0: #{tpu_custom_call.1}
  #allocation0 [shape = 'u32[]', space=smem, size = 0x4, offset = 0x4, fixed_abs, tag = 'smem constant byte address 0x4 - core index']
  #allocation1 [shape = 'u32[144,128]{1,0:T(1,128)}', space=vmem, size = 0x12000, scoped, tag = 'internal scratch']
  #allocation2 [shape = 'f32[4,2,8,8]{3,2,1,0:T(8,128)}', space=vmem, size = 0x8000, scoped, tag = 'scratch operand']
  #allocation3 [shape = 'f32[4,2,8,8]{3,2,1,0:T(8,128)}', space=vmem, size = 0x8000, scoped, tag = 'scratch operand']
  #allocation4 [shape = 'f32[4,2,8,8]{3,2,1,0:T(8,128)}', space=vmem, size = 0x8000, scoped, tag = 'scratch operand']
  #allocation5 [shape = 'f32[4,2,8,8]{3,2,1,0:T(8,128)}', space=vmem, size = 0x8000, scoped, tag = 'scratch operand']
  #allocation6 [shape = 'f32[16,32]{1,0:T(8,128)}', space=vmem, size = 0x2000, scoped, tag = 'scratch operand']
  %s0 = inlined_call_operand.hbm [shape: f32[2,8,32], index: 0, kind: input, shape index: {}]
  %s1 = inlined_call_operand.vmem [shape: f32[2,1,1,8], index: 1, kind: input, shape index: {}]
  %s2 = inlined_call_operand.hbm [shape: f32[2,4,8,8], index: 2, kind: input, shape index: {}]
  %s3 = inlined_call_operand.hbm [shape: bf16[32,128], index: 3, kind: input, shape index: {}]
  %s4 = inlined_call_operand.hbm [shape: f32[1,32], index: 4, kind: input, shape index: {}]
  %s5 = inlined_call_operand.vmem [shape: bf16[4,8,32], index: 5, kind: input, shape index: {}]
  %s6 = inlined_call_operand.vmem [shape: f32[1,32], index: 6, kind: input, shape index: {}]
  %s7 = inlined_call_operand.hbm [shape: f32[2,8,32], index: 7, kind: output, shape index: {}]
  %s8 = sld [smem:[#allocation0]]
  $region85: #{tpu_custom_call.1} parent=0
    _
  %s10 = ssub.s32 1, %s8
  %s11 = scalar_select 0, %s10, %s8
  $region1: #{tpu_custom_call.1} parent=0
    #allocation7 [shape = 'u8[8192]{0}', space=vmem, size = 0x2000, scoped, tag = 'input window, operand 0, single buffered']
    #allocation8 [shape = 's32[2]{0}', space=sflag, size = 0x8, scoped, tag = 'scoped memory for tpu_custom_call.1']
    #allocation9 [shape = 's32[2]{0}', space=sflag, size = 0x8, scoped, tag = 'scoped memory for tpu_custom_call.1']
    #allocation10 [shape = 'u8[16384]{0}', space=vmem, size = 0x4000, scoped, tag = 'input window, operand 2']
    #allocation11 [shape = 's32[2]{0}', space=sflag, size = 0x8, scoped, tag = 'scoped memory for tpu_custom_call.1']
    #allocation12 [shape = 'u8[8192]{0}', space=vmem, size = 0x2000, scoped, tag = 'input window, operand 3, single buffered']
    #allocation13 [shape = 'u8[512]{0}', space=vmem, size = 0x400, scoped, tag = 'input window, operand 4, single buffered']
    #allocation14 [shape = 's32[1]{0}', space=sflag, size = 0x4, scoped, tag = 'scoped memory for tpu_custom_call.1']
    #allocation15 [shape = 'u8[8192]{0}', space=vmem, size = 0x2000, scoped, tag = 'output window, operand 0, single buffered']
    %12 = vsyncpa [#allocation8], 0
    %13 = vsyncpa [#allocation11], 0
    %s14 = scalar_lea.sflag [#allocation11], 1
    %15 = vsyncpa %s14, 0
    %16 = vsyncpa [#allocation14], 0
    %17 = vsyncpa [#allocation9], 0
    loop: start=0, step=1, limit=6
    $region2: #{tpu_custom_call.1} parent=1 // loop_pre_header
      _
    $region3: #{tpu_custom_call.1} parent=1 // loop_header
      %s19 = sphi 0, %s23
      %p20 = scmp.ge.s32.totalorder %s19, 6
      %s26 = sphi 0, %s38
      %s27 = sphi 0, %s34
      %s28 = sphi 0, %s26
      %s29 = sphi 0, %s27
      %s30 = sphi 0, %s28
      %s31 = sphi 0, %s29
      %s41 = sphi 0, %s43
      %s44 = sphi 0, %s41
      %s45 = sphi 0, %s44
      %s61 = sphi 0, %s45
      %s67 = sphi 0, %s69
      %s70 = sphi 0, %s67
      %s71 = sphi 0, %s70
      %s87 = sphi 0, %s71
      %s95 = sphi 0, %s97
      %s98 = sphi 0, %s95
      %s99 = sphi 0, %s98
      %s115 = sphi 0, %s99
      %s119 = sphi 0, %s119
      %s121 = sphi 0, %s119
      %s122 = sphi 0, %s121
      %s136 = sphi 0, %s122
      %s140 = sphi 0, %s140
      %s142 = sphi 0, %s140
      %s143 = sphi 0, %s142
      %s157 = sphi 0, %s143
      %s161 = sphi 0, %s161
      %s163 = sphi 0, %s161
      %s164 = sphi 0, %s163
      %s178 = sphi 0, %s164
      %s182 = sphi 0, %s182
      %s184 = sphi 0, %s182
      %s185 = sphi 0, %s184
      %s199 = sphi 0, %s185
      %s205 = sphi 0, %s207
      %s208 = sphi 0, %s205
      %s209 = sphi 0, %s208
      %s225 = sphi 0, %s209
    $region4: #{tpu_custom_call.1} parent=1 // loop_header_branch
      %22 = sbr.rel (%p20) target = $region8
    $region5: #{tpu_custom_call.1} parent=1 // loop_body
      %s24 = ssub.s32 %s19, 1
      %s25 = ssub.s32 %s19, 2
      %s32 = sadd.s32 1, %s27
      %p33 = scmp.ge.s32.totalorder %s32, 4
      %s34 = scalar_select %p33, 0, %s32
      %s35 = sadd.s32 1, %s26
      %s36 = scalar_select %p33, %s35, %s26
      %p37 = scmp.ge.s32.totalorder %s36, 1
      %s38 = scalar_select %p37, 0, %s36
      %s39 = ssub.s32 %s26, %s38
      %p40 = scmp.eq.s32.totalorder %s39, 0
      %s42 = sadd.s32 %s41, 1
      %s43 = scalar_select %p40, %s41, %s42
      %p46 = pneg %p40
      %p47 = scmp.eq.s32.totalorder %s19, 3
      %p48 = por %p46, %p47
      %p49 = scmp.ne.s32.totalorder %s41, %s44
      %p50 = scmp.eq.s32.totalorder %s19, 0
      %p51 = por %p49, %p50
      %p52 = scmp.ne.s32.totalorder %s41, %s44
      %p53 = scmp.eq.s32.totalorder %s24, 3
      %p54 = por %p52, %p53
      %p55 = scmp.ne.s32.totalorder %s44, %s45
      %p56 = scmp.eq.s32.totalorder %s24, 0
      %p57 = por %p55, %p56
      %p58 = scmp.ne.s32.totalorder %s44, %s45
      %p59 = scmp.eq.s32.totalorder %s25, 3
      %p60 = por %p58, %p59
      %p62 = scmp.ne.s32.totalorder %s45, %s61
      %p63 = scmp.eq.s32.totalorder %s25, 0
      %p64 = por %p62, %p63
      %s65 = ssub.s32 %s26, %s38
      %p66 = scmp.eq.s32.totalorder %s65, 0
      %s68 = sadd.s32 %s67, 1
      %s69 = scalar_select %p66, %s67, %s68
      %p72 = pneg %p66
      %p73 = scmp.eq.s32.totalorder %s19, 3
      %p74 = por %p72, %p73
      %p75 = scmp.ne.s32.totalorder %s67, %s70
      %p76 = scmp.eq.s32.totalorder %s19, 0
      %p77 = por %p75, %p76
      %p78 = scmp.ne.s32.totalorder %s67, %s70
      %p79 = scmp.eq.s32.totalorder %s24, 3
      %p80 = por %p78, %p79
      %p81 = scmp.ne.s32.totalorder %s70, %s71
      %p82 = scmp.eq.s32.totalorder %s24, 0
      %p83 = por %p81, %p82
      %p84 = scmp.ne.s32.totalorder %s70, %s71
      %p85 = scmp.eq.s32.totalorder %s25, 3
      %p86 = por %p84, %p85
      %p88 = scmp.ne.s32.totalorder %s71, %s87
      %p89 = scmp.eq.s32.totalorder %s25, 0
      %p90 = por %p88, %p89
      %s91 = ssub.s32 %s26, %s38
      %s92 = ssub.s32 %s27, %s34
      %s93 = sor.u32 %s91, %s92
      %p94 = scmp.eq.s32.totalorder %s93, 0
      %s96 = sadd.s32 %s95, 1
      %s97 = scalar_select %p94, %s95, %s96
      %p100 = pneg %p94
      %p101 = scmp.eq.s32.totalorder %s19, 3
      %p102 = por %p100, %p101
      %p103 = scmp.ne.s32.totalorder %s95, %s98
      %p104 = scmp.eq.s32.totalorder %s19, 0
      %p105 = por %p103, %p104
      %p106 = scmp.ne.s32.totalorder %s95, %s98
      %p107 = scmp.eq.s32.totalorder %s24, 3
      %p108 = por %p106, %p107
      %p109 = scmp.ne.s32.totalorder %s98, %s99
      %p110 = scmp.eq.s32.totalorder %s24, 0
      %p111 = por %p109, %p110
      %p112 = scmp.ne.s32.totalorder %s98, %s99
      %p113 = scmp.eq.s32.totalorder %s25, 3
      %p114 = por %p112, %p113
      %p116 = scmp.ne.s32.totalorder %s99, %s115
      %p117 = scmp.eq.s32.totalorder %s25, 0
      %p118 = por %p116, %p117
      %s120 = sadd.s32 %s119, 1
      %p123 = scmp.eq.s32.totalorder %s19, 3
      %p124 = scmp.ne.s32.totalorder %s119, %s121
      %p125 = scmp.eq.s32.totalorder %s19, 0
      %p126 = por %p124, %p125
      %p127 = scmp.ne.s32.totalorder %s119, %s121
      %p128 = scmp.eq.s32.totalorder %s24, 3
      %p129 = por %p127, %p128
      %p130 = scmp.ne.s32.totalorder %s121, %s122
      %p131 = scmp.eq.s32.totalorder %s24, 0
      %p132 = por %p130, %p131
      %p133 = scmp.ne.s32.totalorder %s121, %s122
      %p134 = scmp.eq.s32.totalorder %s25, 3
      %p135 = por %p133, %p134
      %p137 = scmp.ne.s32.totalorder %s122, %s136
      %p138 = scmp.eq.s32.totalorder %s25, 0
      %p139 = por %p137, %p138
      %s141 = sadd.s32 %s140, 1
      %p144 = scmp.eq.s32.totalorder %s19, 3
      %p145 = scmp.ne.s32.totalorder %s140, %s142
      %p146 = scmp.eq.s32.totalorder %s19, 0
      %p147 = por %p145, %p146
      %p148 = scmp.ne.s32.totalorder %s140, %s142
      %p149 = scmp.eq.s32.totalorder %s24, 3
      %p150 = por %p148, %p149
      %p151 = scmp.ne.s32.totalorder %s142, %s143
      %p152 = scmp.eq.s32.totalorder %s24, 0
      %p153 = por %p151, %p152
      %p154 = scmp.ne.s32.totalorder %s142, %s143
      %p155 = scmp.eq.s32.totalorder %s25, 3
      %p156 = por %p154, %p155
      %p158 = scmp.ne.s32.totalorder %s143, %s157
      %p159 = scmp.eq.s32.totalorder %s25, 0
      %p160 = por %p158, %p159
      %s162 = sadd.s32 %s161, 1
      %p165 = scmp.eq.s32.totalorder %s19, 3
      %p166 = scmp.ne.s32.totalorder %s161, %s163
      %p167 = scmp.eq.s32.totalorder %s19, 0
      %p168 = por %p166, %p167
      %p169 = scmp.ne.s32.totalorder %s161, %s163
      %p170 = scmp.eq.s32.totalorder %s24, 3
      %p171 = por %p169, %p170
      %p172 = scmp.ne.s32.totalorder %s163, %s164
      %p173 = scmp.eq.s32.totalorder %s24, 0
      %p174 = por %p172, %p173
      %p175 = scmp.ne.s32.totalorder %s163, %s164
      %p176 = scmp.eq.s32.totalorder %s25, 3
      %p177 = por %p175, %p176
      %p179 = scmp.ne.s32.totalorder %s164, %s178
      %p180 = scmp.eq.s32.totalorder %s25, 0
      %p181 = por %p179, %p180
      %s183 = sadd.s32 %s182, 1
      %p186 = scmp.eq.s32.totalorder %s19, 3
      %p187 = scmp.ne.s32.totalorder %s182, %s184
      %p188 = scmp.eq.s32.totalorder %s19, 0
      %p189 = por %p187, %p188
      %p190 = scmp.ne.s32.totalorder %s182, %s184
      %p191 = scmp.eq.s32.totalorder %s24, 3
      %p192 = por %p190, %p191
      %p193 = scmp.ne.s32.totalorder %s184, %s185
      %p194 = scmp.eq.s32.totalorder %s24, 0
      %p195 = por %p193, %p194
      %p196 = scmp.ne.s32.totalorder %s184, %s185
      %p197 = scmp.eq.s32.totalorder %s25, 3
      %p198 = por %p196, %p197
      %p200 = scmp.ne.s32.totalorder %s185, %s199
      %p201 = scmp.eq.s32.totalorder %s25, 0
      %p202 = por %p200, %p201
      %s203 = ssub.s32 %s26, %s38
      %p204 = scmp.eq.s32.totalorder %s203, 0
      %s206 = sadd.s32 %s205, 1
      %s207 = scalar_select %p204, %s205, %s206
      %p210 = pneg %p204
      %p211 = scmp.eq.s32.totalorder %s19, 3
      %p212 = por %p210, %p211
      %p213 = scmp.ne.s32.totalorder %s205, %s208
      %p214 = scmp.eq.s32.totalorder %s19, 0
      %p215 = por %p213, %p214
      %p216 = scmp.ne.s32.totalorder %s205, %s208
      %p217 = scmp.eq.s32.totalorder %s24, 3
      %p218 = por %p216, %p217
      %p219 = scmp.ne.s32.totalorder %s208, %s209
      %p220 = scmp.eq.s32.totalorder %s24, 0
      %p221 = por %p219, %p220
      %p222 = scmp.ne.s32.totalorder %s208, %s209
      %p223 = scmp.eq.s32.totalorder %s25, 3
      %p224 = por %p222, %p223
      %p226 = scmp.ne.s32.totalorder %s209, %s225
      %p227 = scmp.eq.s32.totalorder %s25, 0
      %p228 = por %p226, %p227
      %p229 = scmp.le.s32.totalorder 1, %s19
      %p230 = scmp.lt.s32.totalorder %s19, 5
      %p231 = pnand %p229, %p230
      %p232 = pneg %p231
      // Predicated region
      $region9: #{tpu_custom_call.1} parent=5 // pred_check
        _
      $region10: #{tpu_custom_call.1} parent=5 // pred_check_branch
        %234 = sbr.rel (%p231) target = $region12
      $region11: #{tpu_custom_call.1} parent=5 // pred_region
        %s235 = ssub.s32 %s19, 1
        // Predicated region
        $region13: #{tpu_custom_call.1} parent=11 // pred_check
          %p236 = pneg %p57
        $region14: #{tpu_custom_call.1} parent=11 // pred_check_branch
          %238 = sbr.rel (%p236) target = $region16
        $region15: #{tpu_custom_call.1} parent=11 // pred_region
          %s239 = smul.u32 2, %s28
          %s241 = ssub.s32 256, 256
          %242 = vsyncadd [#allocation8], %s241
          %s243 = smul.addr %s239, 128
          %s244 = scalar_lea.hbm %s0, %s243
          %s245 = sshll.u32 [#allocation7], 4
          %s246 = int_to_ptr.vmem [resolvable:$true] %s245
          %251 = dma.hbm_to_vmem [thread:$0]  %s244, 256, %s246, [#allocation8], 128, 128, 8
        $region16: #{tpu_custom_call.1} parent=11 // pred_fallthru
          _
        // Predicated region
        $region17: #{tpu_custom_call.1} parent=11 // pred_check
          %p252 = pneg %p83
        $region18: #{tpu_custom_call.1} parent=11 // pred_check_branch
          %254 = sbr.rel (%p252) target = $region20
        $region19: #{tpu_custom_call.1} parent=11 // pred_region
          %s255 = smul.u32 2, %s28
          %p256 = scmp.lt.s32.totalorder %s255, 1
          %s257 = scalar_select %p256, %s255, 1
          %s258 = scalar_lea.vmem %s1, %s257
          %s259 = smul.u32 2, %s28
        $region20: #{tpu_custom_call.1} parent=11 // pred_fallthru
          _
        // Predicated region
        $region21: #{tpu_custom_call.1} parent=11 // pred_check
          %p260 = pneg %p132
        $region22: #{tpu_custom_call.1} parent=11 // pred_check_branch
          %262 = sbr.rel (%p260) target = $region24
        $region23: #{tpu_custom_call.1} parent=11 // pred_region
          %s264 = ssub.s32 256, 256
          %265 = vsyncadd [#allocation11], %s264
          %s266 = sshll.u32 [#allocation12], 4
          %s267 = int_to_ptr.vmem [resolvable:$true] %s266
          %272 = dma.hbm_to_vmem [thread:$0]  %s3, 256, %s267, [#allocation11], 64, 64, 4
        $region24: #{tpu_custom_call.1} parent=11 // pred_fallthru
          _
        // Predicated region
        $region25: #{tpu_custom_call.1} parent=11 // pred_check
          %p273 = pneg %p153
        $region26: #{tpu_custom_call.1} parent=11 // pred_check_branch
          %275 = sbr.rel (%p273) target = $region28
        $region27: #{tpu_custom_call.1} parent=11 // pred_region
          %s277 = ssub.s32 16, 16
          %278 = vsyncadd [#allocation14], %s277
          %s280 = sshll.u32 [#allocation13], 4
          %s281 = int_to_ptr.vmem [resolvable:$true] %s280
          %283 = dma.hbm_to_vmem [thread:$0]  %s4, 16, %s281, [#allocation14]
        $region28: #{tpu_custom_call.1} parent=11 // pred_fallthru
          _
        // Predicated region
        $region29: #{tpu_custom_call.1} parent=11 // pred_check
          %p284 = pneg %p174
        $region30: #{tpu_custom_call.1} parent=11 // pred_check_branch
          %286 = sbr.rel (%p284) target = $region32
        $region31: #{tpu_custom_call.1} parent=11 // pred_region
          _
        $region32: #{tpu_custom_call.1} parent=11 // pred_fallthru
          _
        // Predicated region
        $region33: #{tpu_custom_call.1} parent=11 // pred_check
          %p287 = pneg %p195
        $region34: #{tpu_custom_call.1} parent=11 // pred_check_branch
          %289 = sbr.rel (%p287) target = $region36
        $region35: #{tpu_custom_call.1} parent=11 // pred_region
          _
        $region36: #{tpu_custom_call.1} parent=11 // pred_fallthru
          _
      $region12: #{tpu_custom_call.1} parent=5 // pred_fallthru
        _
      %p290 = scmp.lt.s32.totalorder %s19, 4
      // Predicated region
      $region37: #{tpu_custom_call.1} parent=5 // pred_check
        %p291 = pneg %p290
      $region38: #{tpu_custom_call.1} parent=5 // pred_check_branch
        %293 = sbr.rel (%p291) target = $region40
      $region39: #{tpu_custom_call.1} parent=5 // pred_region
        // Predicated region
        $region41: #{tpu_custom_call.1} parent=39 // pred_check
          %p294 = pneg %p105
        $region42: #{tpu_custom_call.1} parent=39 // pred_check_branch
          %296 = sbr.rel (%p294) target = $region44
        $region43: #{tpu_custom_call.1} parent=39 // pred_region
          %s297 = sand.u32 %s19, 1
          %s298 = scalar_lea.sflag [#allocation11], %s297
          %s299 = sand.u32 %s95, 1
          %s300 = smul.addr %s299, 16
          %s301 = scalar_lea.vmem [#allocation10], %s300
          %s302 = smul.u32 2, %s26
          %s304 = ssub.s32 256, 256
          %305 = vsyncadd %s298, %s304
          %s306 = smul.addr %s302, 4
          %s307 = sadd.s32 %s27, %s306
          %s308 = smul.addr %s307, 128
          %s309 = scalar_lea.hbm %s2, %s308
          %s310 = sshll.u32 %s301, 4
          %s311 = int_to_ptr.vmem [resolvable:$true] %s310
          %316 = dma.hbm_to_vmem [thread:$0]  %s309, 256, %s311, %s298, 512, 128, 8
        $region44: #{tpu_custom_call.1} parent=39 // pred_fallthru
          _
      $region40: #{tpu_custom_call.1} parent=5 // pred_fallthru
        _
      %p317 = scmp.le.s32.totalorder 1, %s19
      %p318 = scmp.lt.s32.totalorder %s19, 5
      %p319 = pnand %p317, %p318
      %p320 = pneg %p319
      // Predicated region
      $region45: #{tpu_custom_call.1} parent=5 // pred_check
        _
      $region46: #{tpu_custom_call.1} parent=5 // pred_check_branch
        %322 = sbr.rel (%p319) target = $region48
      $region47: #{tpu_custom_call.1} parent=5 // pred_region
        %s323 = ssub.s32 %s19, 1
        // Predicated region
        $region49: #{tpu_custom_call.1} parent=47 // pred_check
          %p324 = pneg %p57
        $region50: #{tpu_custom_call.1} parent=47 // pred_check_branch
          %326 = sbr.rel (%p324) target = $region52
        $region51: #{tpu_custom_call.1} parent=47 // pred_region
          %327 = dma.done [#allocation8], 256
        $region52: #{tpu_custom_call.1} parent=47 // pred_fallthru
          _
        %s328 = sand.u32 %s24, 1
        %s329 = scalar_lea.sflag [#allocation11], %s328
        %s330 = sand.u32 %s98, 1
        %s331 = smul.addr %s330, 16
        %s332 = scalar_lea.vmem [#allocation10], %s331
        // Predicated region
        $region53: #{tpu_custom_call.1} parent=47 // pred_check
          %p333 = pneg %p111
        $region54: #{tpu_custom_call.1} parent=47 // pred_check_branch
          %335 = sbr.rel (%p333) target = $region56
        $region55: #{tpu_custom_call.1} parent=47 // pred_region
          %336 = dma.done %s329, 256
        $region56: #{tpu_custom_call.1} parent=47 // pred_fallthru
          _
        // Predicated region
        $region57: #{tpu_custom_call.1} parent=47 // pred_check
          %p337 = pneg %p132
        $region58: #{tpu_custom_call.1} parent=47 // pred_check_branch
          %339 = sbr.rel (%p337) target = $region60
        $region59: #{tpu_custom_call.1} parent=47 // pred_region
          %340 = dma.done [#allocation11], 256
        $region60: #{tpu_custom_call.1} parent=47 // pred_fallthru
          _
        // Predicated region
        $region61: #{tpu_custom_call.1} parent=47 // pred_check
          %p341 = pneg %p153
        $region62: #{tpu_custom_call.1} parent=47 // pred_check_branch
          %343 = sbr.rel (%p341) target = $region64
        $region63: #{tpu_custom_call.1} parent=47 // pred_region
          %344 = dma.done [#allocation14], 16
        $region64: #{tpu_custom_call.1} parent=47 // pred_fallthru
          _
        %p345 = pneg %p57
        %p346 = pneg %p54
        %s347 = smul.u32 2, %s28
        %p348 = scmp.lt.s32.totalorder %s347, 1
        %s349 = scalar_select %p348, %s347, 1
        %s350 = scalar_lea.vmem %s1, %s349
        %p351 = pneg %p83
        %p352 = pneg %p80
        %s353 = sand.u32 %s24, 1
        %s354 = scalar_lea.sflag [#allocation11], %s353
        %s355 = sand.u32 %s98, 1
        %s356 = smul.addr %s355, 16
        %s357 = scalar_lea.vmem [#allocation10], %s356
        %p358 = pneg %p111
        %p359 = pneg %p108
        %p360 = pneg %p132
        %p361 = pneg %p129
        %p362 = pneg %p153
        %p363 = pneg %p150
        %p364 = pneg %p174
        %p365 = pneg %p171
        %p366 = pneg %p195
        %p367 = pneg %p192
        %p368 = pneg %p221
        %p369 = pneg %p218
        %s370 = smul.u32 2, %s28
        %s371 = smul.u32 2, %s28
        %p372 = scmp.lt.s32.totalorder %s371, 1
        %s373 = scalar_select %p372, %s371, 1
        %s374 = scalar_lea.vmem %s1, %s373
        %s375 = smul.u32 2, %s28
        %s376 = smul.u32 2, %s28
        %s377 = smul.u32 2, %s28
        %p379 = scmp.eq.s32.totalorder %s29, 0
        // Predicated region
        $region65: #{tpu_custom_call.1} parent=47 // pred_check
          %p380 = pneg %p379
        $region66: #{tpu_custom_call.1} parent=47 // pred_check_branch
          %382 = sbr.rel (%p380) target = $region68
        $region67: #{tpu_custom_call.1} parent=47 // pred_region
          %v383 = vld [vmem:[#allocation7] sm:$0xff]
          %v384 = vld [vmem:[#allocation7 + $0x8] sm:$0xff]
          %v385 = vpack.c.bf16 %v384, %v383
          %v386 = vld [vmem:[#allocation12] sm:$0xf]
          %v387 = vld [vmem:[#allocation12 + $0x4] sm:$0xf]
          %v388 = vld [vmem:[#allocation12 + $0x8] sm:$0xf]
          %v389 = vld [vmem:[#allocation12 + $0xc] sm:$0xf]
          %v394 = vunpack.c.l.b16 %v386
          %v395 = vunpack.c.l.b16 %v387
          %v396 = vunpack.c.l.b16 %v388
          %v397 = vunpack.c.l.b16 %v389
          %v398 = vpack.c.b16 %v395, %v394
          %v399 = vpack.c.b16 %v397, %v396
          %vm402 = vcmask 261120
          %v404 = vsel %vm402, %v385, 0
          %406 = vmatprep.subr.bf16.mxu0 0
          %407 = vmatpush1.bf16.msra.mxu0 %v398
          %408 = vmatprep.subr.bf16.mxu0 0
          %409 = vmatpush1.bf16.msra.mxu0 %v399
          %410 = vmatprep.subr.bf16.mxu0 0
          %411 = vmatpush1.bf16.msra.mxu0 0
          %412 = vmatprep.subr.bf16.mxu0 0
          %413 = vmatpush1.bf16.msra.mxu0 0
          %414 = vmatprep.subr.bf16.mxu0 0
          %415 = vmatpush1.bf16.msra.mxu0 0
          %416 = vmatprep.subr.bf16.mxu0 0
          %417 = vmatpush1.bf16.msra.mxu0 0
          %418 = vmatprep.subr.bf16.mxu0 0
          %419 = vmatpush1.bf16.msra.mxu0 0
          %420 = vmatprep.subr.bf16.mxu0 0
          %421 = vmatpush1.bf16.msra.mxu0 0
          %422 = vmatprep.subr.bf16.mxu0 0
          %423 = vmatpush1.bf16.msra.mxu0 0
          %424 = vmatprep.subr.bf16.mxu0 0
          %425 = vmatpush1.bf16.msra.mxu0 0
          %426 = vmatprep.subr.bf16.mxu0 0
          %427 = vmatpush1.bf16.msra.mxu0 0
          %428 = vmatprep.subr.bf16.mxu0 0
          %429 = vmatpush1.bf16.msra.mxu0 0
          %430 = vmatprep.subr.bf16.mxu0 0
          %431 = vmatpush1.bf16.msra.mxu0 0
          %432 = vmatprep.subr.bf16.mxu0 0
          %433 = vmatpush1.bf16.msra.mxu0 0
          %434 = vmatprep.subr.bf16.mxu0 0
          %435 = vmatpush1.bf16.msra.mxu0 0
          %436 = vmatprep.subr.bf16.mxu0 0
          %437 = vmatpush1.bf16.msra.mxu0 0
          %438 = vmatprep.mubr.bf16.mxu0 0
          %439 = vmatmul.mubr.bf16.gmra.mrb[0].mxu0 %v404
          %v440 = vpop.f32.mrb[0].mxu0
          %v441 = vadd.f32 0.0, %v440
          %v442 = vpop.f32.mrb[0].mxu0
          %v443 = vpop.f32.mrb[0].mxu0
          %v444 = vadd.f32 0.0, %v443
          %v445 = vpop.f32.mrb[0].mxu0
          %446 = vdwg.mxu0
          %v447 = vmul.f32 %v441, 0.35355338
          %v448 = vmul.f32 %v444, 0.35355338
          %vm449 = vcmask 64512
          %450 = vst.msk [vmem:[#allocation2] sm:$0xff] %vm449, %v447
          %451 = vst.msk [vmem:[#allocation2 + $0x8] sm:$0xff] %vm449, %v448
          %454 = vrot.lane.b32.xlu0 %v441, 96
          %v455 = vpop.permute.xlu0 %454
          %456 = vrot.lane.b32.xlu0 %v444, 96
          %v457 = vpop.permute.xlu0 %456
          %460 = vst.msk [vmem:[#allocation3] sm:$0xff] %vm449, %v455
          %461 = vst.msk [vmem:[#allocation3 + $0x8] sm:$0xff] %vm449, %v457
          %462 = vrot.lane.b32.xlu0 %v441, 64
          %v463 = vpop.permute.xlu0 %462
          %464 = vrot.lane.b32.xlu0 %v444, 64
          %v465 = vpop.permute.xlu0 %464
          %468 = vst.msk [vmem:[#allocation4] sm:$0xff] %vm449, %v463
          %469 = vst.msk [vmem:[#allocation4 + $0x8] sm:$0xff] %vm449, %v465
          %v470 = vld [vmem:[#allocation13] sm:$0x1]
          %v472 = vlaneseq
          %v473 = vshrl.u32 %v472, 7
          %v474 = vsub.s32 0, %v473
          %v475 = vrot.slane %v470, %v474
          %476 = vrot.lane.b32.xlu0 %v475, 96
          %v477 = vpop.permute.xlu0 %476
          %v479 = vadd.f32 %v441, %v477
          %v480 = vadd.f32 %v444, %v477
          %v481 = vxor.u32 %v479, 2147483648
          %v482 = vxor.u32 %v480, 2147483648
          %v483 = vmul.f32 %v481, 1.442695
          %v484 = vpow.pop %v483
          %v485 = vmul.f32 %v482, 1.442695
          %v486 = vpow.pop %v485
          %v487 = vadd.f32 %v484, 1.0
          %v488 = vadd.f32 %v486, 1.0
          %v489 = vrcp.pop %v487
          %v490 = vmul.f32 1.0, %v489
          %v491 = vrcp.pop %v488
          %v492 = vmul.f32 1.0, %v491
          %495 = vrot.lane.b32.xlu0 %v490, 32
          %v496 = vpop.permute.xlu0 %495
          %497 = vrot.lane.b32.xlu0 %v492, 32
          %v498 = vpop.permute.xlu0 %497
          %501 = vst.msk [vmem:[#allocation5] sm:$0xff] %vm449, %v496
          %502 = vst.msk [vmem:[#allocation5 + $0x8] sm:$0xff] %vm449, %v498
          %505 = vrot.lane.b32.xlu0 %v447, 120
          %v506 = vpop.permute.xlu0 %505
          %507 = vrot.lane.b32.xlu0 %v448, 120
          %v508 = vpop.permute.xlu0 %507
          %s511 = scalar_lea.vmem [#allocation2], 16
          %512 = vst.msk [vmem:[%s511] sm:$0xff] %vm449, %v506
          %513 = vst.msk [vmem:[%s511 + $0x8] sm:$0xff] %vm449, %v508
          %514 = vrot.lane.b32.xlu0 %v441, 88
          %v515 = vpop.permute.xlu0 %514
          %516 = vrot.lane.b32.xlu0 %v444, 88
          %v517 = vpop.permute.xlu0 %516
          %s520 = scalar_lea.vmem [#allocation3], 16
          %521 = vst.msk [vmem:[%s520] sm:$0xff] %vm449, %v515
          %522 = vst.msk [vmem:[%s520 + $0x8] sm:$0xff] %vm449, %v517
          %523 = vrot.lane.b32.xlu0 %v441, 56
          %v524 = vpop.permute.xlu0 %523
          %525 = vrot.lane.b32.xlu0 %v444, 56
          %v526 = vpop.permute.xlu0 %525
          %s529 = scalar_lea.vmem [#allocation4], 16
          %530 = vst.msk [vmem:[%s529] sm:$0xff] %vm449, %v524
          %531 = vst.msk [vmem:[%s529 + $0x8] sm:$0xff] %vm449, %v526
          %v532 = vld [vmem:[#allocation13] sm:$0x1]
          %v534 = vlaneseq
          %v535 = vshrl.u32 %v534, 7
          %v536 = vsub.s32 0, %v535
          %v537 = vrot.slane %v532, %v536
          %538 = vrot.lane.b32.xlu0 %v537, 96
          %v539 = vpop.permute.xlu0 %538
          %v541 = vadd.f32 %v441, %v539
          %v542 = vadd.f32 %v444, %v539
          %v543 = vxor.u32 %v541, 2147483648
          %v544 = vxor.u32 %v542, 2147483648
          %v545 = vmul.f32 %v543, 1.442695
          %v546 = vpow.pop %v545
          %v547 = vmul.f32 %v544, 1.442695
          %v548 = vpow.pop %v547
          %v549 = vadd.f32 %v546, 1.0
          %v550 = vadd.f32 %v548, 1.0
          %v551 = vrcp.pop %v549
          %v552 = vmul.f32 1.0, %v551
          %v553 = vrcp.pop %v550
          %v554 = vmul.f32 1.0, %v553
          %557 = vrot.lane.b32.xlu0 %v552, 24
          %v558 = vpop.permute.xlu0 %557
          %559 = vrot.lane.b32.xlu0 %v554, 24
          %v560 = vpop.permute.xlu0 %559
          %s563 = scalar_lea.vmem [#allocation5], 16
          %564 = vst.msk [vmem:[%s563] sm:$0xff] %vm449, %v558
          %565 = vst.msk [vmem:[%s563 + $0x8] sm:$0xff] %vm449, %v560
          %566 = vrot.lane.b32.xlu0 %v447, 112
          %v567 = vpop.permute.xlu0 %566
          %568 = vrot.lane.b32.xlu0 %v448, 112
          %v569 = vpop.permute.xlu0 %568
          %s572 = scalar_lea.vmem [#allocation2], 32
          %573 = vst.msk [vmem:[%s572] sm:$0xff] %vm449, %v567
          %574 = vst.msk [vmem:[%s572 + $0x8] sm:$0xff] %vm449, %v569
          %575 = vrot.lane.b32.xlu0 %v441, 80
          %v576 = vpop.permute.xlu0 %575
          %577 = vrot.lane.b32.xlu0 %v444, 80
          %v578 = vpop.permute.xlu0 %577
          %s581 = scalar_lea.vmem [#allocation3], 32
          %582 = vst.msk [vmem:[%s581] sm:$0xff] %vm449, %v576
          %583 = vst.msk [vmem:[%s581 + $0x8] sm:$0xff] %vm449, %v578
          %584 = vrot.lane.b32.xlu0 %v441, 48
          %v585 = vpop.permute.xlu0 %584
          %586 = vrot.lane.b32.xlu0 %v444, 48
          %v587 = vpop.permute.xlu0 %586
          %s590 = scalar_lea.vmem [#allocation4], 32
          %591 = vst.msk [vmem:[%s590] sm:$0xff] %vm449, %v585
          %592 = vst.msk [vmem:[%s590 + $0x8] sm:$0xff] %vm449, %v587
          %v593 = vld [vmem:[#allocation13] sm:$0x1]
          %v595 = vlaneseq
          %v596 = vshrl.u32 %v595, 7
          %v597 = vsub.s32 0, %v596
          %v598 = vrot.slane %v593, %v597
          %599 = vrot.lane.b32.xlu0 %v598, 96
          %v600 = vpop.permute.xlu0 %599
          %v602 = vadd.f32 %v441, %v600
          %v603 = vadd.f32 %v444, %v600
          %v604 = vxor.u32 %v602, 2147483648
          %v605 = vxor.u32 %v603, 2147483648
          %v606 = vmul.f32 %v604, 1.442695
          %v607 = vpow.pop %v606
          %v608 = vmul.f32 %v605, 1.442695
          %v609 = vpow.pop %v608
          %v610 = vadd.f32 %v607, 1.0
          %v611 = vadd.f32 %v609, 1.0
          %v612 = vrcp.pop %v610
          %v613 = vmul.f32 1.0, %v612
          %v614 = vrcp.pop %v611
          %v615 = vmul.f32 1.0, %v614
          %618 = vrot.lane.b32.xlu0 %v613, 16
          %v619 = vpop.permute.xlu0 %618
          %620 = vrot.lane.b32.xlu0 %v615, 16
          %v621 = vpop.permute.xlu0 %620
          %s624 = scalar_lea.vmem [#allocation5], 32
          %625 = vst.msk [vmem:[%s624] sm:$0xff] %vm449, %v619
          %626 = vst.msk [vmem:[%s624 + $0x8] sm:$0xff] %vm449, %v621
          %627 = vrot.lane.b32.xlu0 %v447, 104
          %v628 = vpop.permute.xlu0 %627
          %629 = vrot.lane.b32.xlu0 %v448, 104
          %v630 = vpop.permute.xlu0 %629
          %s633 = scalar_lea.vmem [#allocation2], 48
          %634 = vst.msk [vmem:[%s633] sm:$0xff] %vm449, %v628
          %635 = vst.msk [vmem:[%s633 + $0x8] sm:$0xff] %vm449, %v630
          %636 = vrot.lane.b32.xlu0 %v441, 72
          %v637 = vpop.permute.xlu0 %636
          %638 = vrot.lane.b32.xlu0 %v444, 72
          %v639 = vpop.permute.xlu0 %638
          %s642 = scalar_lea.vmem [#allocation3], 48
          %643 = vst.msk [vmem:[%s642] sm:$0xff] %vm449, %v637
          %644 = vst.msk [vmem:[%s642 + $0x8] sm:$0xff] %vm449, %v639
          %645 = vrot.lane.b32.xlu0 %v441, 40
          %v646 = vpop.permute.xlu0 %645
          %647 = vrot.lane.b32.xlu0 %v444, 40
          %v648 = vpop.permute.xlu0 %647
          %s651 = scalar_lea.vmem [#allocation4], 48
          %652 = vst.msk [vmem:[%s651] sm:$0xff] %vm449, %v646
          %653 = vst.msk [vmem:[%s651 + $0x8] sm:$0xff] %vm449, %v648
          %v654 = vld [vmem:[#allocation13] sm:$0x1]
          %v656 = vlaneseq
          %v657 = vshrl.u32 %v656, 7
          %v658 = vsub.s32 0, %v657
          %v659 = vrot.slane %v654, %v658
          %660 = vrot.lane.b32.xlu0 %v659, 96
          %v661 = vpop.permute.xlu0 %660
          %v663 = vadd.f32 %v441, %v661
          %v664 = vadd.f32 %v444, %v661
          %v665 = vxor.u32 %v663, 2147483648
          %v666 = vxor.u32 %v664, 2147483648
          %v667 = vmul.f32 %v665, 1.442695
          %v668 = vpow.pop %v667
          %v669 = vmul.f32 %v666, 1.442695
          %v670 = vpow.pop %v669
          %v671 = vadd.f32 %v668, 1.0
          %v672 = vadd.f32 %v670, 1.0
          %v673 = vrcp.pop %v671
          %v674 = vmul.f32 1.0, %v673
          %v675 = vrcp.pop %v672
          %v676 = vmul.f32 1.0, %v675
          %679 = vrot.lane.b32.xlu0 %v674, 8
          %v680 = vpop.permute.xlu0 %679
          %681 = vrot.lane.b32.xlu0 %v676, 8
          %v682 = vpop.permute.xlu0 %681
          %s685 = scalar_lea.vmem [#allocation5], 48
          %686 = vst.msk [vmem:[%s685] sm:$0xff] %vm449, %v680
          %687 = vst.msk [vmem:[%s685 + $0x8] sm:$0xff] %vm449, %v682
          %688 = vst.msk [vmem:[#allocation6] sm:$0xff] %vm402, 0.0
          %689 = vst.msk [vmem:[#allocation6 + $0x8] sm:$0xff] %vm402, 0.0
        $region68: #{tpu_custom_call.1} parent=47 // pred_fallthru
          _
        %s690 = smul.u32 %s29, 16
        %s691 = scalar_lea.vmem [#allocation2], %s690
        %v692 = vld [vmem:[%s691] sm:$0xff]
        %v693 = vld [vmem:[%s691 + $0x8] sm:$0xff]
        %v694 = vpack.c.bf16 %v692, %v692
        %v695 = vpack.c.bf16 %v693, %v693
        %s696 = scalar_lea.vmem [#allocation3], %s690
        %v697 = vld [vmem:[%s696] sm:$0xff]
        %v698 = vld [vmem:[%s696 + $0x8] sm:$0xff]
        %v699 = vpack.c.bf16 %v697, %v697
        %v700 = vpack.c.bf16 %v698, %v698
        %s701 = scalar_lea.vmem [#allocation4], %s690
        %v702 = vld [vmem:[%s701] sm:$0xff]
        %v703 = vld [vmem:[%s701 + $0x8] sm:$0xff]
        %v704 = vpack.c.bf16 %v702, %v702
        %v705 = vpack.c.bf16 %v703, %v703
        %v706 = vld [vmem:[%s374] sm:$0x1]
        %v707 = vld [vmem:[%s374 + $0x1] sm:$0x1]
        %v708 = vsub.f32 %v706, 1.0
        %v709 = vsub.f32 %v707, 1.0
        %v710 = vmul.f32 %v708, 1e+09
        %v711 = vmul.f32 %v709, 1e+09
        %v714 = vlaneseq
        %v715 = vshrl.u32 %v714, 7
        %v716 = vsub.s32 0, %v715
        %v717 = vrot.slane %v710, %v716
        %v718 = vlaneseq
        %v719 = vshrl.u32 %v718, 7
        %v720 = vsub.s32 0, %v719
        %v721 = vrot.slane %v711, %v720
        %vm724 = vcmask 64512
        %v726 = vsel %vm724, %v694, 0
        %v729 = vsel %vm724, %v699, 0
        %731 = vmatprep.subr.bf16.mxu0 0
        %732 = vmatpush1.bf16.xpose.msra.mxu0 %v729
        %733 = vmatprep.subr.bf16.mxu0 0
        %734 = vmatpush1.bf16.xpose.msra.mxu0 0
        %735 = vmatprep.subr.bf16.mxu0 0
        %736 = vmatpush1.bf16.xpose.msra.mxu0 0
        %737 = vmatprep.subr.bf16.mxu0 0
        %738 = vmatpush1.bf16.xpose.msra.mxu0 0
        %739 = vmatprep.subr.bf16.mxu0 0
        %740 = vmatpush1.bf16.xpose.msra.mxu0 0
        %741 = vmatprep.subr.bf16.mxu0 0
        %742 = vmatpush1.bf16.xpose.msra.mxu0 0
        %743 = vmatprep.subr.bf16.mxu0 0
        %744 = vmatpush1.bf16.xpose.msra.mxu0 0
        %745 = vmatprep.subr.bf16.mxu0 0
        %746 = vmatpush1.bf16.xpose.msra.mxu0 0
        %747 = vmatprep.subr.bf16.mxu0 0
        %748 = vmatpush1.bf16.xpose.msra.mxu0 0
        %749 = vmatprep.subr.bf16.mxu0 0
        %750 = vmatpush1.bf16.xpose.msra.mxu0 0
        %751 = vmatprep.subr.bf16.mxu0 0
        %752 = vmatpush1.bf16.xpose.msra.mxu0 0
        %753 = vmatprep.subr.bf16.mxu0 0
        %754 = vmatpush1.bf16.xpose.msra.mxu0 0
        %755 = vmatprep.subr.bf16.mxu0 0
        %756 = vmatpush1.bf16.xpose.msra.mxu0 0
        %757 = vmatprep.subr.bf16.mxu0 0
        %758 = vmatpush1.bf16.xpose.msra.mxu0 0
        %759 = vmatprep.subr.bf16.mxu0 0
        %760 = vmatpush1.bf16.xpose.msra.mxu0 0
        %761 = vmatprep.subr.bf16.mxu0 0
        %762 = vmatpush1.bf16.xpose.msra.mxu0 0
        %763 = vmatprep.mubr.bf16.mxu0 0
        %764 = vmatmul.mubr.bf16.gmra.mrb[0].mxu0 %v726
        %v765 = vpop.f32.mrb[0].mxu0
        %v766 = vadd.f32 %v717, %v765
        %v767 = vpop.f32.mrb[0].mxu0
        %v768 = vpop.f32.mrb[0].mxu0
        %v769 = vpop.f32.mrb[0].mxu0
        %770 = vdwg.mxu0
        %v772 = vsel %vm724, %v695, 0
        %v775 = vsel %vm724, %v700, 0
        %777 = vmatprep.subr.bf16.mxu0 0
        %778 = vmatpush1.bf16.xpose.msra.mxu0 %v775
        %779 = vmatprep.subr.bf16.mxu0 0
        %780 = vmatpush1.bf16.xpose.msra.mxu0 0
        %781 = vmatprep.subr.bf16.mxu0 0
        %782 = vmatpush1.bf16.xpose.msra.mxu0 0
        %783 = vmatprep.subr.bf16.mxu0 0
        %784 = vmatpush1.bf16.xpose.msra.mxu0 0
        %785 = vmatprep.subr.bf16.mxu0 0
        %786 = vmatpush1.bf16.xpose.msra.mxu0 0
        %787 = vmatprep.subr.bf16.mxu0 0
        %788 = vmatpush1.bf16.xpose.msra.mxu0 0
        %789 = vmatprep.subr.bf16.mxu0 0
        %790 = vmatpush1.bf16.xpose.msra.mxu0 0
        %791 = vmatprep.subr.bf16.mxu0 0
        %792 = vmatpush1.bf16.xpose.msra.mxu0 0
        %793 = vmatprep.subr.bf16.mxu0 0
        %794 = vmatpush1.bf16.xpose.msra.mxu0 0
        %795 = vmatprep.subr.bf16.mxu0 0
        %796 = vmatpush1.bf16.xpose.msra.mxu0 0
        %797 = vmatprep.subr.bf16.mxu0 0
        %798 = vmatpush1.bf16.xpose.msra.mxu0 0
        %799 = vmatprep.subr.bf16.mxu0 0
        %800 = vmatpush1.bf16.xpose.msra.mxu0 0
        %801 = vmatprep.subr.bf16.mxu0 0
        %802 = vmatpush1.bf16.xpose.msra.mxu0 0
        %803 = vmatprep.subr.bf16.mxu0 0
        %804 = vmatpush1.bf16.xpose.msra.mxu0 0
        %805 = vmatprep.subr.bf16.mxu0 0
        %806 = vmatpush1.bf16.xpose.msra.mxu0 0
        %807 = vmatprep.subr.bf16.mxu0 0
        %808 = vmatpush1.bf16.xpose.msra.mxu0 0
        %809 = vmatprep.mubr.bf16.mxu0 0
        %810 = vmatmul.mubr.bf16.gmra.mrb[0].mxu0 %v772
        %v811 = vpop.f32.mrb[0].mxu0
        %v812 = vadd.f32 %v721, %v811
        %v813 = vpop.f32.mrb[0].mxu0
        %v814 = vpop.f32.mrb[0].mxu0
        %v815 = vpop.f32.mrb[0].mxu0
        %816 = vdwg.mxu0
        %v817 = vld [vmem:[%s332] sm:$0xff]
        %v818 = vld [vmem:[%s332 + $0x8] sm:$0xff]
        %v819 = vadd.f32 %v766, %v817
        %v820 = vadd.f32 %v812, %v818
        %v821 = vsel %vm724, %v819, -inf
        %822 = vmax.xlane.f32.xlu0 %v821
        %v823 = vpop.xlane.xlu0 %822
        %v824 = vsel %vm724, %v820, -inf
        %825 = vmax.xlane.f32.xlu0 %v824
        %v826 = vpop.xlane.xlu0 %825
        %v827 = vsub.f32 %v819, %v823
        %v828 = vsub.f32 %v820, %v826
        %v829 = vmul.f32 %v827, 1.442695
        %v830 = vpow.pop %v829
        %v831 = vmul.f32 %v828, 1.442695
        %v832 = vpow.pop %v831
        %v833 = vsel %vm724, %v830, 0.0
        %834 = vadd.xlane.f32.xlu0 %v833
        %v835 = vpop.xlane.xlu0 %834
        %v836 = vsel %vm724, %v832, 0.0
        %837 = vadd.xlane.f32.xlu0 %v836
        %v838 = vpop.xlane.xlu0 %837
        %v839 = vrcp.pop %v835
        %v840 = vrcp.pop %v838
        %v841 = vmul.f32 %v830, %v839
        %v842 = vmul.f32 %v832, %v840
        %v843 = vpack.c.bf16 %v841, %v841
        %v844 = vpack.c.bf16 %v842, %v842
        %v846 = vsel %vm724, %v843, 0
        %vm848 = vcmask 1043456
        %v850 = vsel %vm848, %v704, 0
        %852 = vmatprep.subr.bf16.mxu0 0
        %853 = vmatpush1.bf16.msra.mxu0 %v850
        %854 = vmatprep.subr.bf16.mxu0 0
        %855 = vmatpush1.bf16.msra.mxu0 0
        %856 = vmatprep.subr.bf16.mxu0 0
        %857 = vmatpush1.bf16.msra.mxu0 0
        %858 = vmatprep.subr.bf16.mxu0 0
        %859 = vmatpush1.bf16.msra.mxu0 0
        %860 = vmatprep.subr.bf16.mxu0 0
        %861 = vmatpush1.bf16.msra.mxu0 0
        %862 = vmatprep.subr.bf16.mxu0 0
        %863 = vmatpush1.bf16.msra.mxu0 0
        %864 = vmatprep.subr.bf16.mxu0 0
        %865 = vmatpush1.bf16.msra.mxu0 0
        %866 = vmatprep.subr.bf16.mxu0 0
        %867 = vmatpush1.bf16.msra.mxu0 0
        %868 = vmatprep.subr.bf16.mxu0 0
        %869 = vmatpush1.bf16.msra.mxu0 0
        %870 = vmatprep.subr.bf16.mxu0 0
        %871 = vmatpush1.bf16.msra.mxu0 0
        %872 = vmatprep.subr.bf16.mxu0 0
        %873 = vmatpush1.bf16.msra.mxu0 0
        %874 = vmatprep.subr.bf16.mxu0 0
        %875 = vmatpush1.bf16.msra.mxu0 0
        %876 = vmatprep.subr.bf16.mxu0 0
        %877 = vmatpush1.bf16.msra.mxu0 0
        %878 = vmatprep.subr.bf16.mxu0 0
        %879 = vmatpush1.bf16.msra.mxu0 0
        %880 = vmatprep.subr.bf16.mxu0 0
        %881 = vmatpush1.bf16.msra.mxu0 0
        %882 = vmatprep.subr.bf16.mxu0 0
        %883 = vmatpush1.bf16.msra.mxu0 0
        %884 = vmatprep.mubr.bf16.mxu0 0
        %885 = vmatmul.mubr.bf16.gmra.mrb[0].mxu0 %v846
        %v886 = vpop.f32.mrb[0].mxu0
        %v887 = vadd.f32 0.0, %v886
        %v888 = vpop.f32.mrb[0].mxu0
        %v889 = vpop.f32.mrb[0].mxu0
        %v890 = vpop.f32.mrb[0].mxu0
        %891 = vdwg.mxu0
        %v893 = vsel %vm724, %v844, 0
        %v896 = vsel %vm848, %v705, 0
        %898 = vmatprep.subr.bf16.mxu0 0
        %899 = vmatpush1.bf16.msra.mxu0 %v896
        %900 = vmatprep.subr.bf16.mxu0 0
        %901 = vmatpush1.bf16.msra.mxu0 0
        %902 = vmatprep.subr.bf16.mxu0 0
        %903 = vmatpush1.bf16.msra.mxu0 0
        %904 = vmatprep.subr.bf16.mxu0 0
        %905 = vmatpush1.bf16.msra.mxu0 0
        %906 = vmatprep.subr.bf16.mxu0 0
        %907 = vmatpush1.bf16.msra.mxu0 0
        %908 = vmatprep.subr.bf16.mxu0 0
        %909 = vmatpush1.bf16.msra.mxu0 0
        %910 = vmatprep.subr.bf16.mxu0 0
        %911 = vmatpush1.bf16.msra.mxu0 0
        %912 = vmatprep.subr.bf16.mxu0 0
        %913 = vmatpush1.bf16.msra.mxu0 0
        %914 = vmatprep.subr.bf16.mxu0 0
        %915 = vmatpush1.bf16.msra.mxu0 0
        %916 = vmatprep.subr.bf16.mxu0 0
        %917 = vmatpush1.bf16.msra.mxu0 0
        %918 = vmatprep.subr.bf16.mxu0 0
        %919 = vmatpush1.bf16.msra.mxu0 0
        %920 = vmatprep.subr.bf16.mxu0 0
        %921 = vmatpush1.bf16.msra.mxu0 0
        %922 = vmatprep.subr.bf16.mxu0 0
        %923 = vmatpush1.bf16.msra.mxu0 0
        %924 = vmatprep.subr.bf16.mxu0 0
        %925 = vmatpush1.bf16.msra.mxu0 0
        %926 = vmatprep.subr.bf16.mxu0 0
        %927 = vmatpush1.bf16.msra.mxu0 0
        %928 = vmatprep.subr.bf16.mxu0 0
        %929 = vmatpush1.bf16.msra.mxu0 0
        %930 = vmatprep.mubr.bf16.mxu0 0
        %931 = vmatmul.mubr.bf16.gmra.mrb[0].mxu0 %v893
        %v932 = vpop.f32.mrb[0].mxu0
        %v933 = vadd.f32 0.0, %v932
        %v934 = vpop.f32.mrb[0].mxu0
        %v935 = vpop.f32.mrb[0].mxu0
        %v936 = vpop.f32.mrb[0].mxu0
        %937 = vdwg.mxu0
        %s938 = scalar_lea.vmem [#allocation5], %s690
        %v939 = vld [vmem:[%s938] sm:$0xff]
        %v940 = vld [vmem:[%s938 + $0x8] sm:$0xff]
        %v941 = vmul.f32 %v887, %v939
        %v942 = vmul.f32 %v933, %v940
        %v943 = vpack.c.bf16 %v941, %v941
        %v944 = vpack.c.bf16 %v942, %v942
        %v945 = vld [vmem:[#allocation6] sm:$0xff]
        %v946 = vld [vmem:[#allocation6 + $0x8] sm:$0xff]
        %s947 = smul.addr %s29, 4
        %s948 = scalar_lea.vmem %s5, %s947
        %v949 = vld [vmem:[%s948] sm:$0xf]
        %v952 = vunpack.c.l.b16 %v943
        %v953 = vunpack.c.l.b16 %v944
        %v954 = vpack.c.b16 %v953, %v952
        %v956 = vsel %vm724, %v954, 0
        %v959 = vsel %vm848, %v949, 0
        %961 = vmatprep.subr.bf16.mxu0 0
        %962 = vmatpush1.bf16.msra.mxu0 %v959
        %963 = vmatprep.subr.bf16.mxu0 0
        %964 = vmatpush1.bf16.msra.mxu0 0
        %965 = vmatprep.subr.bf16.mxu0 0
        %966 = vmatpush1.bf16.msra.mxu0 0
        %967 = vmatprep.subr.bf16.mxu0 0
        %968 = vmatpush1.bf16.msra.mxu0 0
        %969 = vmatprep.subr.bf16.mxu0 0
        %970 = vmatpush1.bf16.msra.mxu0 0
        %971 = vmatprep.subr.bf16.mxu0 0
        %972 = vmatpush1.bf16.msra.mxu0 0
        %973 = vmatprep.subr.bf16.mxu0 0
        %974 = vmatpush1.bf16.msra.mxu0 0
        %975 = vmatprep.subr.bf16.mxu0 0
        %976 = vmatpush1.bf16.msra.mxu0 0
        %977 = vmatprep.subr.bf16.mxu0 0
        %978 = vmatpush1.bf16.msra.mxu0 0
        %979 = vmatprep.subr.bf16.mxu0 0
        %980 = vmatpush1.bf16.msra.mxu0 0
        %981 = vmatprep.subr.bf16.mxu0 0
        %982 = vmatpush1.bf16.msra.mxu0 0
        %983 = vmatprep.subr.bf16.mxu0 0
        %984 = vmatpush1.bf16.msra.mxu0 0
        %985 = vmatprep.subr.bf16.mxu0 0
        %986 = vmatpush1.bf16.msra.mxu0 0
        %987 = vmatprep.subr.bf16.mxu0 0
        %988 = vmatpush1.bf16.msra.mxu0 0
        %989 = vmatprep.subr.bf16.mxu0 0
        %990 = vmatpush1.bf16.msra.mxu0 0
        %991 = vmatprep.subr.bf16.mxu0 0
        %992 = vmatpush1.bf16.msra.mxu0 0
        %993 = vmatprep.mubr.bf16.mxu0 0
        %994 = vmatmul.mubr.bf16.gmra.mrb[0].mxu0 %v956
        %v995 = vpop.f32.mrb[0].mxu0
        %v996 = vadd.f32 0.0, %v995
        %v997 = vpop.f32.mrb[0].mxu0
        %v998 = vpop.f32.mrb[0].mxu0
        %v999 = vadd.f32 0.0, %v998
        %v1000 = vpop.f32.mrb[0].mxu0
        %1001 = vdwg.mxu0
        %v1002 = vadd.f32 %v945, %v996
        %v1003 = vadd.f32 %v946, %v999
        %vm1004 = vcmask 261120
        %1005 = vst.msk [vmem:[#allocation6] sm:$0xff] %vm1004, %v1002
        %1006 = vst.msk [vmem:[#allocation6 + $0x8] sm:$0xff] %vm1004, %v1003
        %p1007 = scmp.eq.s32.totalorder %s29, 3
        // Predicated region
        $region69: #{tpu_custom_call.1} parent=47 // pred_check
          %p1008 = pneg %p1007
        $region70: #{tpu_custom_call.1} parent=47 // pred_check_branch
          %1010 = sbr.rel (%p1008) target = $region72
        $region71: #{tpu_custom_call.1} parent=47 // pred_region
          %v1011 = vld [vmem:[#allocation6] sm:$0xff]
          %v1012 = vld [vmem:[#allocation6 + $0x8] sm:$0xff]
          %v1013 = vld [vmem:[%s6] sm:$0x1]
          %v1015 = vlaneseq
          %v1016 = vshrl.u32 %v1015, 7
          %v1017 = vsub.s32 0, %v1016
          %v1018 = vrot.slane %v1013, %v1017
          %v1020 = vadd.f32 %v1011, %v1018
          %v1021 = vadd.f32 %v1012, %v1018
          %1022 = vst.msk [vmem:[#allocation15] sm:$0xff] %vm1004, %v1020
          %1023 = vst.msk [vmem:[#allocation15 + $0x8] sm:$0xff] %vm1004, %v1021
        $region72: #{tpu_custom_call.1} parent=47 // pred_fallthru
          _
        // Predicated region
        $region73: #{tpu_custom_call.1} parent=47 // pred_check
          %p1024 = pneg %p218
        $region74: #{tpu_custom_call.1} parent=47 // pred_check_branch
          %1026 = sbr.rel (%p1024) target = $region76
        $region75: #{tpu_custom_call.1} parent=47 // pred_region
          %s1027 = smul.u32 2, %s28
          %s1029 = ssub.s32 256, 256
          %1030 = vsyncadd [#allocation9], %s1029
          %s1031 = smul.addr %s1027, 128
          %s1032 = scalar_lea.hbm %s7, %s1031
          %s1033 = sshll.u32 [#allocation15], 4
          %s1034 = int_to_ptr.vmem [resolvable:$true] %s1033
          %1039 = dma.vmem_to_hbm [thread:$0]  %s1034, 256, %s1032, [#allocation9], 128, 128, 8
        $region76: #{tpu_custom_call.1} parent=47 // pred_fallthru
          _
        // Predicated region
        $region77: #{tpu_custom_call.1} parent=47 // pred_check
          %p1040 = pneg %p218
        $region78: #{tpu_custom_call.1} parent=47 // pred_check_branch
          %1042 = sbr.rel (%p1040) target = $region80
        $region79: #{tpu_custom_call.1} parent=47 // pred_region
          %1043 = dma.done [#allocation9], 256
        $region80: #{tpu_custom_call.1} parent=47 // pred_fallthru
          _
      $region48: #{tpu_custom_call.1} parent=5 // pred_fallthru
        _
      %p1044 = scmp.le.s32.totalorder 2, %s19
      // Predicated region
      $region81: #{tpu_custom_call.1} parent=5 // pred_check
        %p1045 = pneg %p1044
      $region82: #{tpu_custom_call.1} parent=5 // pred_check_branch
        %1047 = sbr.rel (%p1045) target = $region84
      $region83: #{tpu_custom_call.1} parent=5 // pred_region
        %s1048 = ssub.s32 %s19, 2
      $region84: #{tpu_custom_call.1} parent=5 // pred_fallthru
        _
    $region6: #{tpu_custom_call.1} parent=1 // loop_footer
      %s23 = sadd.s32 1, %s19
    $region7: #{tpu_custom_call.1} parent=1 // loop_footer_branch
      %18 = sbr.rel target = $region3
    $region8: #{tpu_custom_call.1} parent=1 // loop_exit
      _
    %1049 = vsyncpa [#allocation8], 1
    %s1050 = scalar_lea.sflag [#allocation8], 1
    %1051 = vsyncpa %s1050, 1
    %1052 = vsyncpa [#allocation11], 1
    %s1053 = scalar_lea.sflag [#allocation11], 1
    %1054 = vsyncpa %s1053, 1
    %1055 = vsyncpa [#allocation14], 1
    %1056 = vsyncpa [#allocation9], 1
    %s1057 = scalar_lea.sflag [#allocation9], 1
    %1058 = vsyncpa %s1057, 1

</llo_original>
